<compile_context>
chip_gen: v7x
topology: tpu7x:2x2x1
jax: 0.10.0
libtpu: 0.0.40
codegen_flags: <defaults>
</compile_context>

<pallas_src>
import functools
import math

import jax
import jax.numpy as jnp
from jax.experimental import pallas as pl
from jax.experimental.pallas import tpu as pltpu


# ---------------------------------------------------------------------------
# Pallas kernel: one recurrent step per grid iteration.
#   grid = (T,), "arbitrary" (serial recurrence).
#   h is carried in a VMEM scratch; W_hh is resident in VMEM for all steps.
# ---------------------------------------------------------------------------
def _cgru_seq_kernel(HP,
                     h0_ref,      # (1, HP)       resident (constant index_map)
                     gpre_ref,    # (1, 1, 6*HP)  per-step precomputed gates
                     whh_ref,     # (HP, 3*HP)    resident recurrent weight
                     h_ref,       # (1, 1, HP)    per-step h_t output
                     rg_ref,      # (1, 1, HP)    per-step resetgate output
                     ig_ref,      # (1, 1, HP)    per-step inputgate output
                     ng_ref,      # (1, 1, HP)    per-step newgate output
                     h_scr):      # VMEM (1, HP)  f32 hidden-state carry
    t = pl.program_id(0)

    @pl.when(t == 0)
    def _():
        h_scr[...] = h0_ref[...]

    h_prev = h_scr[...]                                   # (1, HP) f32

    g_pre = gpre_ref[0]                                   # (1, 6*HP) f32
    gate_x = g_pre[:, : 3 * HP]                           # x/context part (complete)
    gate_hc = g_pre[:, 3 * HP:]                           # context part of gate_h

    # Only h-dependent matmul sits on the serial critical path.
    gate_h = gate_hc + jnp.dot(h_prev.astype(whh_ref.dtype), whh_ref[...],
                               preferred_element_type=jnp.float32)

    # All slice offsets are multiples of HP=128 -> whole-vreg views.
    resetgate = jax.nn.sigmoid(gate_x[:, :HP] + gate_h[:, :HP])
    inputgate = jax.nn.sigmoid(gate_x[:, HP:2 * HP] + gate_h[:, HP:2 * HP])
    newgate = jnp.tanh(gate_x[:, 2 * HP:] + resetgate * gate_h[:, 2 * HP:])
    h_t = newgate + inputgate * (h_prev - newgate)

    h_scr[...] = h_t
    h_ref[0] = h_t
    rg_ref[0] = resetgate
    ig_ref[0] = inputgate
    ng_ref[0] = newgate
    # TODO(synk): dropout_rate=0 and sigmoid_output=False in this config, so
    # neither Dropout nor the output sigmoid is emitted.


# ---------------------------------------------------------------------------
# One-time host-side packing: fold ctx_wt into the weights, 128-lane-pad every
# gate segment, and split the weights into a "precompute" block (x/context)
# and the resident recurrent block (h).
# ---------------------------------------------------------------------------
def pack_cgru_params(params, *, ctx_wt, hidden_dim,
                     weight_dtype=jnp.float32, lane=128):
    ctx_wt = float(ctx_wt)          # guard: must be a static (non-traced) value
    w = ctx_wt
    omw = 1.0 - ctx_wt
    H = hidden_dim
    HP = ((H + lane - 1) // lane) * lane

    def pad_gates(m):               # (rows, 3H) -> (rows, 3*HP), per-gate padding
        rows = m.shape[0]
        m3 = m.reshape(rows, 3, H)
        m3 = jnp.pad(m3, ((0, 0), (0, 0), (0, HP - H)))
        return m3.reshape(rows, 3 * HP)

    gx_from_x = pad_gates(params["w_i2h"] * omw)          # (I, 3*HP)
    gx_from_c = pad_gates(params["w_ci2h"] * w)           # (C, 3*HP)
    gh_from_c = pad_gates(params["w_ch2h"] * w)           # (C, 3*HP)
    I = gx_from_x.shape[0]

    # rows ordered [x | c]; columns ordered [gate_x | gate_h(context part)]
    w_pre = jnp.concatenate([
        jnp.concatenate([gx_from_x, jnp.zeros((I, 3 * HP), jnp.float32)], axis=1),
        jnp.concatenate([gx_from_c, gh_from_c], axis=1),
    ], axis=0)                                             # (I+C, 6*HP)

    b_pre = jnp.concatenate([
        pad_gates(params["b_i2h"] * omw + params["b_ci2h"] * w),
        pad_gates(params["b_h2h"] * omw + params["b_ch2h"] * w),
    ], axis=1)                                             # (1, 6*HP)

    w_hh = pad_gates(params["w_h2h"] * omw)                # (H, 3*HP)
    w_hh = jnp.pad(w_hh, ((0, HP - H), (0, 0)))            # (HP, 3*HP)

    w_o = jnp.pad(params["w_h2o"], ((0, HP - H), (0, 0)))  # (HP, O)

    return {
        "hp": HP,
        "w_pre": w_pre.astype(weight_dtype),
        "b_pre": b_pre.astype(jnp.float32),
        "w_hh": w_hh.astype(weight_dtype),
        "w_o": w_o.astype(weight_dtype),
        "b_o": params["b_h2o"].astype(jnp.float32),
    }


# ---------------------------------------------------------------------------
# Sequence forward: applies CGRU.forward for t = 0..T-1 (identical per-step
# semantics), with the recurrence fused into one pallas_call.
# ---------------------------------------------------------------------------
def cgru_forward_sequence_pallas(x_seq, ctx_seq, h0, packed, *,
                                 hidden_dim, output_dim):
    T = x_seq.shape[0]
    H = hidden_dim
    HP = packed["hp"]
    O = output_dim
    wd = packed["w_pre"].dtype

    # One batched matmul for everything that does not depend on h.
    xc = jnp.concatenate([x_seq.astype(jnp.float32),
                          ctx_seq.astype(jnp.float32)], axis=-1).astype(wd)
    g_pre = (jnp.dot(xc, packed["w_pre"], preferred_element_type=jnp.float32)
             + packed["b_pre"]).reshape(T, 1, 6 * HP)

    h0p = jnp.zeros((1, HP), jnp.float32).at[:, :H].set(
        h0.reshape(1, H).astype(jnp.float32))

    step_out_spec = pl.BlockSpec((1, 1, HP), lambda t: (t, 0, 0))
    out_shapes = tuple(jax.ShapeDtypeStruct((T, 1, HP), jnp.float32)
                       for _ in range(4))

    h_seq, rg_seq, ig_seq, ng_seq = pl.pallas_call(
        functools.partial(_cgru_seq_kernel, HP),
        out_shape=out_shapes,
        grid=(T,),
        in_specs=[
            pl.BlockSpec((1, HP), lambda t: (0, 0)),              # h0 (resident)
            pl.BlockSpec((1, 1, 6 * HP), lambda t: (t, 0, 0)),    # per-step pre-gates
            pl.BlockSpec((HP, 3 * HP), lambda t: (0, 0)),         # W_hh (resident)
        ],
        out_specs=(step_out_spec,) * 4,
        scratch_shapes=[pltpu.VMEM((1, HP), jnp.float32)],
        compiler_params=pltpu.CompilerParams(
            dimension_semantics=("arbitrary",)),
    )(h0p, g_pre, packed["w_hh"])

    h_seq = h_seq.reshape(T, HP)
    # Deferred output projection: one batched matmul over the whole sequence.
    yhat_seq = (jnp.dot(h_seq.astype(wd), packed["w_o"],
                        preferred_element_type=jnp.float32) + packed["b_o"])

    return (yhat_seq,
            h_seq[:, :H],
            rg_seq.reshape(T, HP)[:, :H],
            ig_seq.reshape(T, HP)[:, :H],
            ng_seq.reshape(T, HP)[:, :H])


# Single-step API mirroring CGRU.forward's return structure.
def cgru_forward_pallas(x, hidden, context_t, packed, *, hidden_dim, output_dim):
    yhat, h_seq, rg, ig, ng = cgru_forward_sequence_pallas(
        x.reshape(1, -1), context_t.reshape(1, -1),
        hidden.reshape(1, hidden_dim), packed,
        hidden_dim=hidden_dim, output_dim=output_dim)
    yhat_t = yhat.reshape(1, 1, output_dim)
    h_t = h_seq.reshape(1, 1, hidden_dim)
    return [yhat_t, h_t], [rg.reshape(-1), ig.reshape(-1), ng.reshape(-1)]


# ---------------------------------------------------------------------------
# Deterministic parameter init (mirrors CGRU.reset_parameters: U(-std, std),
# std = 1/sqrt(hidden_dim)).  Weights stored as (in_features, out_features).
# ---------------------------------------------------------------------------
def init_cgru_params(key, input_dim, hidden_dim, output_dim, context_dim):
    std = 1.0 / math.sqrt(hidden_dim)
    ks = jax.random.split(key, 10)

    def u(k, shape):
        return jax.random.uniform(k, shape, jnp.float32, minval=-std, maxval=std)

    return {
        "w_i2h": u(ks[0], (input_dim, 3 * hidden_dim)),
        "b_i2h": u(ks[1], (1, 3 * hidden_dim)),
        "w_h2h": u(ks[2], (hidden_dim, 3 * hidden_dim)),
        "b_h2h": u(ks[3], (1, 3 * hidden_dim)),
        "w_ci2h": u(ks[4], (context_dim, 3 * hidden_dim)),
        "b_ci2h": u(ks[5], (1, 3 * hidden_dim)),
        "w_ch2h": u(ks[6], (context_dim, 3 * hidden_dim)),
        "b_ch2h": u(ks[7], (1, 3 * hidden_dim)),
        "w_h2o": u(ks[8], (hidden_dim, output_dim)),
        "b_h2o": u(ks[9], (1, output_dim)),
    }


# Pure-JAX reference (unfused, matches the PyTorch forward) for correctness.
def cgru_forward_ref(x, hidden, context_t, params, *, ctx_wt, hidden_dim):
    x2 = x.reshape(1, -1)
    h2 = hidden.reshape(1, -1)
    c2 = context_t.reshape(1, -1)
    gate_x = ((x2 @ params["w_i2h"] + params["b_i2h"]) * (1 - ctx_wt)
              + (c2 @ params["w_ci2h"] + params["b_ci2h"]) * ctx_wt)
    gate_h = ((h2 @ params["w_h2h"] + params["b_h2h"]) * (1 - ctx_wt)
              + (c2 @ params["w_ch2h"] + params["b_ch2h"]) * ctx_wt)
    H = hidden_dim
    i_r, i_i, i_n = gate_x[:, :H], gate_x[:, H:2 * H], gate_x[:, 2 * H:]
    h_r, h_i, h_n = gate_h[:, :H], gate_h[:, H:2 * H], gate_h[:, 2 * H:]
    rg = jax.nn.sigmoid(i_r + h_r)
    ig = jax.nn.sigmoid(i_i + h_i)
    ng = jnp.tanh(i_n + rg * h_n)
    h_t = ng + ig * (h2 - ng)
    yhat = h_t @ params["w_h2o"] + params["b_h2o"]
    return yhat, h_t, rg, ig, ng


if __name__ == "__main__":
    # Force f32 matmuls everywhere so the XLA reference and the kernel agree.
    jax.config.update("jax_default_matmul_precision", "highest")

    input_dim, hidden_dim, output_dim, context_dim = 16, 32, 16, 8
    ctx_wt = 0.5
    T = 8

    key = jax.random.PRNGKey(0)
    kp, kx, kc = jax.random.split(key, 3)

    params = init_cgru_params(kp, input_dim, hidden_dim, output_dim, context_dim)
    x_seq = jax.random.normal(kx, (T, input_dim), jnp.float32)
    ctx_seq = jax.random.normal(kc, (T, context_dim), jnp.float32)
    h0 = jnp.zeros((1, 1, hidden_dim), jnp.float32)          # get_zero_states()

    # ---- f32 weights: tight correctness check ---------------------------------
    packed = pack_cgru_params(params, ctx_wt=ctx_wt, hidden_dim=hidden_dim)
    yhat, h_seq, rg, ig, ng = cgru_forward_sequence_pallas(
        x_seq, ctx_seq, h0, packed, hidden_dim=hidden_dim, output_dim=output_dim)
    jax.block_until_ready((yhat, h_seq, rg, ig, ng))

    # step-by-step pure-JAX reference
    h = h0.reshape(1, hidden_dim)
    y_r, h_r, r_r, i_r, n_r = [], [], [], [], []
    for t in range(T):
        y, h, r, i_, n = cgru_forward_ref(x_seq[t], h, ctx_seq[t], params,
                                          ctx_wt=ctx_wt, hidden_dim=hidden_dim)
        y_r.append(y[0]); h_r.append(h[0]); r_r.append(r[0])
        i_r.append(i_[0]); n_r.append(n[0])
    y_r = jnp.stack(y_r); h_r = jnp.stack(h_r)
    r_r = jnp.stack(r_r); i_r = jnp.stack(i_r); n_r = jnp.stack(n_r)

    assert jnp.allclose(yhat, y_r, atol=1e-4)
    assert jnp.allclose(h_seq, h_r, atol=1e-4)
    assert jnp.allclose(rg, r_r, atol=1e-4)
    assert jnp.allclose(ig, i_r, atol=1e-4)
    assert jnp.allclose(ng, n_r, atol=1e-4)

    # ---- single-step API (mirrors CGRU.forward) --------------------------------
    (y1, h1), cache1 = cgru_forward_pallas(
        x_seq[0], h0, ctx_seq[0], packed,
        hidden_dim=hidden_dim, output_dim=output_dim)
    jax.block_until_ready((y1, h1, cache1))
    assert jnp.allclose(y1.reshape(-1), y_r[0], atol=1e-4)
    assert jnp.allclose(h1.reshape(-1), h_r[0], atol=1e-4)
    assert jnp.allclose(cache1[0], r_r[0], atol=1e-4)

    # ---- bf16 weights (v6e/v7x MXU path), f32 accumulate + f32 gates -----------
    packed_bf16 = pack_cgru_params(params, ctx_wt=ctx_wt, hidden_dim=hidden_dim,
                                   weight_dtype=jnp.bfloat16)
    yhat_b, h_b, *_ = cgru_forward_sequence_pallas(
        x_seq, ctx_seq, h0, packed_bf16,
        hidden_dim=hidden_dim, output_dim=output_dim)
    jax.block_until_ready((yhat_b, h_b))
    assert jnp.allclose(yhat_b, y_r, atol=1e-1)    # loose: bf16 weight rounding
    assert jnp.allclose(h_b, h_r, atol=1e-1)

    print("KERNEL_OK")
</pallas_src>

<mosaic_0001>
module attributes {stable_mosaic.version = 11 : i64} {
  func.func @_cgru_seq_kernel(%arg0: i32, %arg1: memref<1x128xf32, #tpu.memory_space<vmem>>, %arg2: memref<1x1x768xf32, #tpu.memory_space<vmem>>, %arg3: memref<128x384xf32, #tpu.memory_space<vmem>>, %arg4: memref<1x1x128xf32, #tpu.memory_space<vmem>>, %arg5: memref<1x1x128xf32, #tpu.memory_space<vmem>>, %arg6: memref<1x1x128xf32, #tpu.memory_space<vmem>>, %arg7: memref<1x1x128xf32, #tpu.memory_space<vmem>>, %arg8: memref<1x128xf32, #tpu.memory_space<vmem>>) attributes {dimension_semantics = [#tpu.dimension_semantics<arbitrary>], iteration_bounds = array<i64: 8>, scalar_prefetch = 0 : i64, scratch_operands = 1 : i64, tpu.core_type = #tpu.core_type<tc>, window_params = [{pipeline_mode = #tpu.pipeline_mode<synchronous>, transform_indices = @transform_0, window_bounds = array<i64: 1, 128>}, {transform_indices = @transform_1, window_bounds = array<i64: 1, 1, 768>}, {pipeline_mode = #tpu.pipeline_mode<synchronous>, transform_indices = @transform_2, window_bounds = array<i64: 128, 384>}, {transform_indices = @transform_3, window_bounds = array<i64: 1, 1, 128>}, {transform_indices = @transform_4, window_bounds = array<i64: 1, 1, 128>}, {transform_indices = @transform_5, window_bounds = array<i64: 1, 1, 128>}, {transform_indices = @transform_6, window_bounds = array<i64: 1, 1, 128>}]} {
    %c0_i32 = arith.constant 0 : i32
    %0 = arith.cmpi eq, %arg0, %c0_i32 : i32
    %1 = arith.extui %0 : i1 to i32
    %c0_i32_0 = arith.constant 0 : i32
    %2 = arith.cmpi ne, %1, %c0_i32_0 : i32
    scf.if %2 {
      %c0_23 = arith.constant 0 : index
      %c0_24 = arith.constant 0 : index
      %48 = vector.load %arg1[%c0_23, %c0_24] : memref<1x128xf32, #tpu.memory_space<vmem>>, vector<1x128xf32>
      %c0_25 = arith.constant 0 : index
      %c0_26 = arith.constant 0 : index
      %49 = vector.load %arg8[%c0_25, %c0_26] : memref<1x128xf32, #tpu.memory_space<vmem>>, vector<1x128xf32>
      tpu.vector_store %arg8[%c0_25, %c0_26], %48 {strides = array<i32>} : memref<1x128xf32, #tpu.memory_space<vmem>>, vector<1x128xf32>,
    } else {
    }
    %c0 = arith.constant 0 : index
    %c0_1 = arith.constant 0 : index
    %3 = vector.load %arg8[%c0, %c0_1] : memref<1x128xf32, #tpu.memory_space<vmem>>, vector<1x128xf32>
    %c0_2 = arith.constant 0 : index
    %c0_3 = arith.constant 0 : index
    %c0_4 = arith.constant 0 : index
    %4 = vector.load %arg2[%c0_2, %c0_3, %c0_4] : memref<1x1x768xf32, #tpu.memory_space<vmem>>, vector<1x1x768xf32>
    %5 = vector.shape_cast %4 : vector<1x1x768xf32> to vector<1x768xf32>
    %6 = vector.extract_strided_slice %5 {offsets = [0, 0], sizes = [1, 384], strides = [1, 1]} : vector<1x768xf32> to vector<1x384xf32>
    %7 = vector.extract_strided_slice %5 {offsets = [0, 384], sizes = [1, 384], strides = [1, 1]} : vector<1x768xf32> to vector<1x384xf32>
    %c0_5 = arith.constant 0 : index
    %c0_6 = arith.constant 0 : index
    %8 = vector.load %arg3[%c0_5, %c0_6] : memref<128x384xf32, #tpu.memory_space<vmem>>, vector<128x384xf32>
    %cst = arith.constant dense<0.000000e+00> : vector<1x384xf32>
    %9 = tpu.matmul %3, %8, %cst {dimension_numbers = #tpu.dot_dimension_numbers<[1], [0], [0], [1], [0, 0, 1, 1], [], []>, precision = #tpu.contract_precision<fp32>} : vector<1x128xf32>, vector<128x384xf32>, vector<1x384xf32> -> vector<1x384xf32>
    %10 = arith.addf %7, %9 : vector<1x384xf32>
    %11 = vector.extract_strided_slice %6 {offsets = [0, 0], sizes = [1, 128], strides = [1, 1]} : vector<1x384xf32> to vector<1x128xf32>
    %12 = vector.extract_strided_slice %10 {offsets = [0, 0], sizes = [1, 128], strides = [1, 1]} : vector<1x384xf32> to vector<1x128xf32>
    %13 = arith.addf %11, %12 : vector<1x128xf32>
    %14 = arith.negf %13 : vector<1x128xf32>
    %15 = math.exp %14 : vector<1x128xf32>
    %cst_7 = arith.constant 1.000000e+00 : f32
    %16 = vector.broadcast %cst_7 : f32 to vector<1x128xf32>
    %17 = arith.addf %16, %15 : vector<1x128xf32>
    %18 = arith.divf %16, %17 : vector<1x128xf32>
    %19 = vector.extract_strided_slice %6 {offsets = [0, 128], sizes = [1, 128], strides = [1, 1]} : vector<1x384xf32> to vector<1x128xf32>
    %20 = vector.extract_strided_slice %10 {offsets = [0, 128], sizes = [1, 128], strides = [1, 1]} : vector<1x384xf32> to vector<1x128xf32>
    %21 = arith.addf %19, %20 : vector<1x128xf32>
    %22 = arith.negf %21 : vector<1x128xf32>
    %23 = math.exp %22 : vector<1x128xf32>
    %cst_8 = arith.constant 1.000000e+00 : f32
    %24 = vector.broadcast %cst_8 : f32 to vector<1x128xf32>
    %25 = arith.addf %24, %23 : vector<1x128xf32>
    %26 = arith.divf %24, %25 : vector<1x128xf32>
    %27 = vector.extract_strided_slice %6 {offsets = [0, 256], sizes = [1, 128], strides = [1, 1]} : vector<1x384xf32> to vector<1x128xf32>
    %28 = vector.extract_strided_slice %10 {offsets = [0, 256], sizes = [1, 128], strides = [1, 1]} : vector<1x384xf32> to vector<1x128xf32>
    %29 = arith.mulf %18, %28 : vector<1x128xf32>
    %30 = arith.addf %27, %29 : vector<1x128xf32>
    %31 = math.tanh %30 : vector<1x128xf32>
    %32 = arith.subf %3, %31 : vector<1x128xf32>
    %33 = arith.mulf %26, %32 : vector<1x128xf32>
    %34 = arith.addf %31, %33 : vector<1x128xf32>
    %c0_9 = arith.constant 0 : index
    %c0_10 = arith.constant 0 : index
    %35 = vector.load %arg8[%c0_9, %c0_10] : memref<1x128xf32, #tpu.memory_space<vmem>>, vector<1x128xf32>
    tpu.vector_store %arg8[%c0_9, %c0_10], %34 {strides = array<i32>} : memref<1x128xf32, #tpu.memory_space<vmem>>, vector<1x128xf32>,
    %c0_11 = arith.constant 0 : index
    %c0_12 = arith.constant 0 : index
    %c0_13 = arith.constant 0 : index
    %36 = vector.load %arg4[%c0_11, %c0_12, %c0_13] : memref<1x1x128xf32, #tpu.memory_space<vmem>>, vector<1x1x128xf32>
    %37 = vector.shape_cast %36 : vector<1x1x128xf32> to vector<1x128xf32>
    %38 = vector.shape_cast %34 : vector<1x128xf32> to vector<1x1x128xf32>
    tpu.vector_store %arg4[%c0_11, %c0_12, %c0_13], %38 {strides = array<i32>} : memref<1x1x128xf32, #tpu.memory_space<vmem>>, vector<1x1x128xf32>,
    %c0_14 = arith.constant 0 : index
    %c0_15 = arith.constant 0 : index
    %c0_16 = arith.constant 0 : index
    %39 = vector.load %arg5[%c0_14, %c0_15, %c0_16] : memref<1x1x128xf32, #tpu.memory_space<vmem>>, vector<1x1x128xf32>
    %40 = vector.shape_cast %39 : vector<1x1x128xf32> to vector<1x128xf32>
    %41 = vector.shape_cast %18 : vector<1x128xf32> to vector<1x1x128xf32>
    tpu.vector_store %arg5[%c0_14, %c0_15, %c0_16], %41 {strides = array<i32>} : memref<1x1x128xf32, #tpu.memory_space<vmem>>, vector<1x1x128xf32>,
    %c0_17 = arith.constant 0 : index
    %c0_18 = arith.constant 0 : index
    %c0_19 = arith.constant 0 : index
    %42 = vector.load %arg6[%c0_17, %c0_18, %c0_19] : memref<1x1x128xf32, #tpu.memory_space<vmem>>, vector<1x1x128xf32>
    %43 = vector.shape_cast %42 : vector<1x1x128xf32> to vector<1x128xf32>
    %44 = vector.shape_cast %26 : vector<1x128xf32> to vector<1x1x128xf32>
    tpu.vector_store %arg6[%c0_17, %c0_18, %c0_19], %44 {strides = array<i32>} : memref<1x1x128xf32, #tpu.memory_space<vmem>>, vector<1x1x128xf32>,
    %c0_20 = arith.constant 0 : index
    %c0_21 = arith.constant 0 : index
    %c0_22 = arith.constant 0 : index
    %45 = vector.load %arg7[%c0_20, %c0_21, %c0_22] : memref<1x1x128xf32, #tpu.memory_space<vmem>>, vector<1x1x128xf32>
    %46 = vector.shape_cast %45 : vector<1x1x128xf32> to vector<1x128xf32>
    %47 = vector.shape_cast %31 : vector<1x128xf32> to vector<1x1x128xf32>
    tpu.vector_store %arg7[%c0_20, %c0_21, %c0_22], %47 {strides = array<i32>} : memref<1x1x128xf32, #tpu.memory_space<vmem>>, vector<1x1x128xf32>,
    return
  }
  func.func @transform_0(%arg0: i32) -> (i32, i32) {
    %c0_i32 = arith.constant 0 : i32
    %c0_i32_0 = arith.constant 0 : i32
    %c0_i32_1 = arith.constant 0 : i32
    return %c0_i32, %c0_i32_0 : i32, i32
  }
  func.func @transform_1(%arg0: i32) -> (i32, i32, i32) {
    %c0_i32 = arith.constant 0 : i32
    %c0_i32_0 = arith.constant 0 : i32
    %c0_i32_1 = arith.constant 0 : i32
    return %arg0, %c0_i32, %c0_i32_0 : i32, i32, i32
  }
  func.func @transform_2(%arg0: i32) -> (i32, i32) {
    %c0_i32 = arith.constant 0 : i32
    %c0_i32_0 = arith.constant 0 : i32
    %c0_i32_1 = arith.constant 0 : i32
    return %c0_i32, %c0_i32_0 : i32, i32
  }
  func.func @transform_3(%arg0: i32) -> (i32, i32, i32) {
    %c0_i32 = arith.constant 0 : i32
    %c0_i32_0 = arith.constant 0 : i32
    %c0_i32_1 = arith.constant 0 : i32
    return %arg0, %c0_i32, %c0_i32_0 : i32, i32, i32
  }
  func.func @transform_4(%arg0: i32) -> (i32, i32, i32) {
    %c0_i32 = arith.constant 0 : i32
    %c0_i32_0 = arith.constant 0 : i32
    %c0_i32_1 = arith.constant 0 : i32
    return %arg0, %c0_i32, %c0_i32_0 : i32, i32, i32
  }
  func.func @transform_5(%arg0: i32) -> (i32, i32, i32) {
    %c0_i32 = arith.constant 0 : i32
    %c0_i32_0 = arith.constant 0 : i32
    %c0_i32_1 = arith.constant 0 : i32
    return %arg0, %c0_i32, %c0_i32_0 : i32, i32, i32
  }
  func.func @transform_6(%arg0: i32) -> (i32, i32, i32) {
    %c0_i32 = arith.constant 0 : i32
    %c0_i32_0 = arith.constant 0 : i32
    %c0_i32_1 = arith.constant 0 : i32
    return %arg0, %c0_i32, %c0_i32_0 : i32, i32, i32
  }
}

</mosaic_0001>

<llo_original>
// kernel: tpu_custom_call.1
$region0: #{tpu_custom_call.1}
  #allocation0 [shape = 'u32[]', space=smem, size = 0x4, offset = 0x4, fixed_abs, tag = 'smem constant byte address 0x4 - core index']
  #allocation1 [shape = 'u32[144,128]{1,0:T(1,128)}', space=vmem, size = 0x12000, scoped, tag = 'internal scratch']
  #allocation2 [shape = 'f32[1,128]{1,0:T(1,128)}', space=vmem, size = 0x200, scoped, tag = 'scratch operand']
  %s0 = inlined_call_operand.hbm [shape: f32[1,128], index: 0, kind: input, shape index: {}]
  %s1 = inlined_call_operand.hbm [shape: f32[8,1,768], index: 1, kind: input, shape index: {}]
  %s2 = inlined_call_operand.hbm [shape: f32[128,384], index: 2, kind: input, shape index: {}]
  %s3 = inlined_call_operand.hbm [shape: f32[8,1,128], index: 3, kind: output, shape index: {0}]
  %s4 = inlined_call_operand.hbm [shape: f32[8,1,128], index: 4, kind: output, shape index: {1}]
  %s5 = inlined_call_operand.hbm [shape: f32[8,1,128], index: 5, kind: output, shape index: {2}]
  %s6 = inlined_call_operand.hbm [shape: f32[8,1,128], index: 6, kind: output, shape index: {3}]
  %7 = xla_tuple %s3, %s4, %s5, %s6
  %s8 = sld [smem:[#allocation0]]
  $region85: #{tpu_custom_call.1} parent=0
    _
  %s10 = ssub.s32 1, %s8
  %s11 = scalar_select 0, %s10, %s8
  $region1: #{tpu_custom_call.1} parent=0
    #allocation3 [shape = 'u8[512]{0}', space=vmem, size = 0x400, scoped, tag = 'input window, operand 0, single buffered']
    #allocation4 [shape = 's32[2]{0}', space=sflag, size = 0x8, scoped, tag = 'scoped memory for tpu_custom_call.1']
    #allocation5 [shape = 's32[2]{0}', space=sflag, size = 0x8, scoped, tag = 'scoped memory for tpu_custom_call.1']
    #allocation6 [shape = 'u8[6144]{0}', space=vmem, size = 0x1800, scoped, tag = 'input window, operand 1']
    #allocation7 [shape = 's32[2]{0}', space=sflag, size = 0x8, scoped, tag = 'scoped memory for tpu_custom_call.1']
    #allocation8 [shape = 'u8[196608]{0}', space=vmem, size = 0x30000, scoped, tag = 'input window, operand 2, single buffered']
    #allocation9 [shape = 'u8[1024]{0}', space=vmem, size = 0x400, scoped, tag = 'output window, operand 0']
    #allocation10 [shape = 'u8[1024]{0}', space=vmem, size = 0x400, scoped, tag = 'output window, operand 1']
    #allocation11 [shape = 's32[2]{0}', space=sflag, size = 0x8, scoped, tag = 'scoped memory for tpu_custom_call.1']
    #allocation12 [shape = 'u8[1024]{0}', space=vmem, size = 0x400, scoped, tag = 'output window, operand 2']
    #allocation13 [shape = 'u8[1024]{0}', space=vmem, size = 0x400, scoped, tag = 'output window, operand 3']
    #allocation14 [shape = 's32[2]{0}', space=sflag, size = 0x8, scoped, tag = 'scoped memory for tpu_custom_call.1']
    %12 = vsyncpa [#allocation4], 0
    %13 = vsyncpa [#allocation7], 0
    %s14 = scalar_lea.sflag [#allocation7], 1
    %15 = vsyncpa %s14, 0
    %16 = vsyncpa [#allocation5], 0
    %s17 = scalar_lea.sflag [#allocation5], 1
    %18 = vsyncpa %s17, 0
    %19 = vsyncpa [#allocation11], 0
    %s20 = scalar_lea.sflag [#allocation11], 1
    %21 = vsyncpa %s20, 0
    %22 = vsyncpa [#allocation14], 0
    %s23 = scalar_lea.sflag [#allocation14], 1
    %24 = vsyncpa %s23, 0
    loop: start=0, step=1, limit=10
    $region2: #{tpu_custom_call.1} parent=1 // loop_pre_header
      _
    $region3: #{tpu_custom_call.1} parent=1 // loop_header
      %s26 = sphi 0, %s30
      %p27 = scmp.ge.s32.totalorder %s26, 10
      %s34 = sphi 0, %s34
      %s36 = sphi 0, %s34
      %s37 = sphi 0, %s36
      %s51 = sphi 0, %s37
      %s57 = sphi 0, %s59
      %s60 = sphi 0, %s57
      %s61 = sphi 0, %s60
      %s77 = sphi 0, %s61
      %s81 = sphi 0, %s81
      %s83 = sphi 0, %s81
      %s84 = sphi 0, %s83
      %s98 = sphi 0, %s84
      %s104 = sphi 0, %s106
      %s107 = sphi 0, %s104
      %s108 = sphi 0, %s107
      %s124 = sphi 0, %s108
      %s130 = sphi 0, %s132
      %s133 = sphi 0, %s130
      %s134 = sphi 0, %s133
      %s150 = sphi 0, %s134
      %s156 = sphi 0, %s158
      %s159 = sphi 0, %s156
      %s160 = sphi 0, %s159
      %s176 = sphi 0, %s160
      %s182 = sphi 0, %s184
      %s185 = sphi 0, %s182
      %s186 = sphi 0, %s185
      %s202 = sphi 0, %s186
    $region4: #{tpu_custom_call.1} parent=1 // loop_header_branch
      %29 = sbr.rel (%p27) target = $region8
    $region5: #{tpu_custom_call.1} parent=1 // loop_body
      %s31 = ssub.s32 %s26, 1
      %s32 = ssub.s32 %s26, 2
      %s33 = sadd.s32 %s26, 1
      %s35 = sadd.s32 %s34, 1
      %p38 = scmp.eq.s32.totalorder %s26, 7
      %p39 = scmp.ne.s32.totalorder %s34, %s36
      %p40 = scmp.eq.s32.totalorder %s26, 0
      %p41 = por %p39, %p40
      %p42 = scmp.ne.s32.totalorder %s34, %s36
      %p43 = scmp.eq.s32.totalorder %s31, 7
      %p44 = por %p42, %p43
      %p45 = scmp.ne.s32.totalorder %s36, %s37
      %p46 = scmp.eq.s32.totalorder %s31, 0
      %p47 = por %p45, %p46
      %p48 = scmp.ne.s32.totalorder %s36, %s37
      %p49 = scmp.eq.s32.totalorder %s32, 7
      %p50 = por %p48, %p49
      %p52 = scmp.ne.s32.totalorder %s37, %s51
      %p53 = scmp.eq.s32.totalorder %s32, 0
      %p54 = por %p52, %p53
      %s55 = ssub.s32 %s26, %s33
      %p56 = scmp.eq.s32.totalorder %s55, 0
      %s58 = sadd.s32 %s57, 1
      %s59 = scalar_select %p56, %s57, %s58
      %p62 = pneg %p56
      %p63 = scmp.eq.s32.totalorder %s26, 7
      %p64 = por %p62, %p63
      %p65 = scmp.ne.s32.totalorder %s57, %s60
      %p66 = scmp.eq.s32.totalorder %s26, 0
      %p67 = por %p65, %p66
      %p68 = scmp.ne.s32.totalorder %s57, %s60
      %p69 = scmp.eq.s32.totalorder %s31, 7
      %p70 = por %p68, %p69
      %p71 = scmp.ne.s32.totalorder %s60, %s61
      %p72 = scmp.eq.s32.totalorder %s31, 0
      %p73 = por %p71, %p72
      %p74 = scmp.ne.s32.totalorder %s60, %s61
      %p75 = scmp.eq.s32.totalorder %s32, 7
      %p76 = por %p74, %p75
      %p78 = scmp.ne.s32.totalorder %s61, %s77
      %p79 = scmp.eq.s32.totalorder %s32, 0
      %p80 = por %p78, %p79
      %s82 = sadd.s32 %s81, 1
      %p85 = scmp.eq.s32.totalorder %s26, 7
      %p86 = scmp.ne.s32.totalorder %s81, %s83
      %p87 = scmp.eq.s32.totalorder %s26, 0
      %p88 = por %p86, %p87
      %p89 = scmp.ne.s32.totalorder %s81, %s83
      %p90 = scmp.eq.s32.totalorder %s31, 7
      %p91 = por %p89, %p90
      %p92 = scmp.ne.s32.totalorder %s83, %s84
      %p93 = scmp.eq.s32.totalorder %s31, 0
      %p94 = por %p92, %p93
      %p95 = scmp.ne.s32.totalorder %s83, %s84
      %p96 = scmp.eq.s32.totalorder %s32, 7
      %p97 = por %p95, %p96
      %p99 = scmp.ne.s32.totalorder %s84, %s98
      %p100 = scmp.eq.s32.totalorder %s32, 0
      %p101 = por %p99, %p100
      %s102 = ssub.s32 %s26, %s33
      %p103 = scmp.eq.s32.totalorder %s102, 0
      %s105 = sadd.s32 %s104, 1
      %s106 = scalar_select %p103, %s104, %s105
      %p109 = pneg %p103
      %p110 = scmp.eq.s32.totalorder %s26, 7
      %p111 = por %p109, %p110
      %p112 = scmp.ne.s32.totalorder %s104, %s107
      %p113 = scmp.eq.s32.totalorder %s26, 0
      %p114 = por %p112, %p113
      %p115 = scmp.ne.s32.totalorder %s104, %s107
      %p116 = scmp.eq.s32.totalorder %s31, 7
      %p117 = por %p115, %p116
      %p118 = scmp.ne.s32.totalorder %s107, %s108
      %p119 = scmp.eq.s32.totalorder %s31, 0
      %p120 = por %p118, %p119
      %p121 = scmp.ne.s32.totalorder %s107, %s108
      %p122 = scmp.eq.s32.totalorder %s32, 7
      %p123 = por %p121, %p122
      %p125 = scmp.ne.s32.totalorder %s108, %s124
      %p126 = scmp.eq.s32.totalorder %s32, 0
      %p127 = por %p125, %p126
      %s128 = ssub.s32 %s26, %s33
      %p129 = scmp.eq.s32.totalorder %s128, 0
      %s131 = sadd.s32 %s130, 1
      %s132 = scalar_select %p129, %s130, %s131
      %p135 = pneg %p129
      %p136 = scmp.eq.s32.totalorder %s26, 7
      %p137 = por %p135, %p136
      %p138 = scmp.ne.s32.totalorder %s130, %s133
      %p139 = scmp.eq.s32.totalorder %s26, 0
      %p140 = por %p138, %p139
      %p141 = scmp.ne.s32.totalorder %s130, %s133
      %p142 = scmp.eq.s32.totalorder %s31, 7
      %p143 = por %p141, %p142
      %p144 = scmp.ne.s32.totalorder %s133, %s134
      %p145 = scmp.eq.s32.totalorder %s31, 0
      %p146 = por %p144, %p145
      %p147 = scmp.ne.s32.totalorder %s133, %s134
      %p148 = scmp.eq.s32.totalorder %s32, 7
      %p149 = por %p147, %p148
      %p151 = scmp.ne.s32.totalorder %s134, %s150
      %p152 = scmp.eq.s32.totalorder %s32, 0
      %p153 = por %p151, %p152
      %s154 = ssub.s32 %s26, %s33
      %p155 = scmp.eq.s32.totalorder %s154, 0
      %s157 = sadd.s32 %s156, 1
      %s158 = scalar_select %p155, %s156, %s157
      %p161 = pneg %p155
      %p162 = scmp.eq.s32.totalorder %s26, 7
      %p163 = por %p161, %p162
      %p164 = scmp.ne.s32.totalorder %s156, %s159
      %p165 = scmp.eq.s32.totalorder %s26, 0
      %p166 = por %p164, %p165
      %p167 = scmp.ne.s32.totalorder %s156, %s159
      %p168 = scmp.eq.s32.totalorder %s31, 7
      %p169 = por %p167, %p168
      %p170 = scmp.ne.s32.totalorder %s159, %s160
      %p171 = scmp.eq.s32.totalorder %s31, 0
      %p172 = por %p170, %p171
      %p173 = scmp.ne.s32.totalorder %s159, %s160
      %p174 = scmp.eq.s32.totalorder %s32, 7
      %p175 = por %p173, %p174
      %p177 = scmp.ne.s32.totalorder %s160, %s176
      %p178 = scmp.eq.s32.totalorder %s32, 0
      %p179 = por %p177, %p178
      %s180 = ssub.s32 %s26, %s33
      %p181 = scmp.eq.s32.totalorder %s180, 0
      %s183 = sadd.s32 %s182, 1
      %s184 = scalar_select %p181, %s182, %s183
      %p187 = pneg %p181
      %p188 = scmp.eq.s32.totalorder %s26, 7
      %p189 = por %p187, %p188
      %p190 = scmp.ne.s32.totalorder %s182, %s185
      %p191 = scmp.eq.s32.totalorder %s26, 0
      %p192 = por %p190, %p191
      %p193 = scmp.ne.s32.totalorder %s182, %s185
      %p194 = scmp.eq.s32.totalorder %s31, 7
      %p195 = por %p193, %p194
      %p196 = scmp.ne.s32.totalorder %s185, %s186
      %p197 = scmp.eq.s32.totalorder %s31, 0
      %p198 = por %p196, %p197
      %p199 = scmp.ne.s32.totalorder %s185, %s186
      %p200 = scmp.eq.s32.totalorder %s32, 7
      %p201 = por %p199, %p200
      %p203 = scmp.ne.s32.totalorder %s186, %s202
      %p204 = scmp.eq.s32.totalorder %s32, 0
      %p205 = por %p203, %p204
      %p206 = scmp.le.s32.totalorder 1, %s26
      %p207 = scmp.lt.s32.totalorder %s26, 9
      %p208 = pnand %p206, %p207
      %p209 = pneg %p208
      // Predicated region
      $region9: #{tpu_custom_call.1} parent=5 // pred_check
        _
      $region10: #{tpu_custom_call.1} parent=5 // pred_check_branch
        %211 = sbr.rel (%p208) target = $region12
      $region11: #{tpu_custom_call.1} parent=5 // pred_region
        %s212 = ssub.s32 %s26, 1
        // Predicated region
        $region13: #{tpu_custom_call.1} parent=11 // pred_check
          %p213 = pneg %p47
        $region14: #{tpu_custom_call.1} parent=11 // pred_check_branch
          %215 = sbr.rel (%p213) target = $region16
        $region15: #{tpu_custom_call.1} parent=11 // pred_region
          %s217 = ssub.s32 16, 16
          %218 = vsyncadd [#allocation4], %s217
          %s220 = sshll.u32 [#allocation3], 4
          %s221 = int_to_ptr.vmem [resolvable:$true] %s220
          %223 = dma.hbm_to_vmem [thread:$0]  %s0, 16, %s221, [#allocation4]
        $region16: #{tpu_custom_call.1} parent=11 // pred_fallthru
          _
        // Predicated region
        $region17: #{tpu_custom_call.1} parent=11 // pred_check
          %p224 = pneg %p94
        $region18: #{tpu_custom_call.1} parent=11 // pred_check_branch
          %226 = sbr.rel (%p224) target = $region20
        $region19: #{tpu_custom_call.1} parent=11 // pred_region
          %s228 = ssub.s32 6144, 6144
          %229 = vsyncadd [#allocation7], %s228
          %s230 = sshll.u32 [#allocation8], 4
          %s231 = int_to_ptr.vmem [resolvable:$true] %s230
          %236 = dma.hbm_to_vmem [thread:$0]  %s2, 6144, %s231, [#allocation7], 384, 384, 24
        $region20: #{tpu_custom_call.1} parent=11 // pred_fallthru
          _
      $region12: #{tpu_custom_call.1} parent=5 // pred_fallthru
        _
      %p237 = scmp.lt.s32.totalorder %s26, 8
      // Predicated region
      $region21: #{tpu_custom_call.1} parent=5 // pred_check
        %p238 = pneg %p237
      $region22: #{tpu_custom_call.1} parent=5 // pred_check_branch
        %240 = sbr.rel (%p238) target = $region24
      $region23: #{tpu_custom_call.1} parent=5 // pred_region
        // Predicated region
        $region25: #{tpu_custom_call.1} parent=23 // pred_check
          %p241 = pneg %p67
        $region26: #{tpu_custom_call.1} parent=23 // pred_check_branch
          %243 = sbr.rel (%p241) target = $region28
        $region27: #{tpu_custom_call.1} parent=23 // pred_region
          %s244 = sand.u32 %s26, 1
          %s245 = scalar_lea.sflag [#allocation7], %s244
          %s246 = sand.u32 %s57, 1
          %s247 = smul.addr %s246, 6
          %s248 = scalar_lea.vmem [#allocation6], %s247
          %s250 = ssub.s32 96, 96
          %251 = vsyncadd %s245, %s250
          %s252 = smul.addr %s26, 6
          %s253 = smul.addr %s252, 16
          %s254 = scalar_lea.hbm %s1, %s253
          %s256 = sshll.u32 %s248, 4
          %s257 = int_to_ptr.vmem [resolvable:$true] %s256
          %259 = dma.hbm_to_vmem [thread:$0]  %s254, 96, %s257, %s245
        $region28: #{tpu_custom_call.1} parent=23 // pred_fallthru
          _
      $region24: #{tpu_custom_call.1} parent=5 // pred_fallthru
        _
      %p260 = scmp.le.s32.totalorder 1, %s26
      %p261 = scmp.lt.s32.totalorder %s26, 9
      %p262 = pnand %p260, %p261
      %p263 = pneg %p262
      // Predicated region
      $region29: #{tpu_custom_call.1} parent=5 // pred_check
        _
      $region30: #{tpu_custom_call.1} parent=5 // pred_check_branch
        %265 = sbr.rel (%p262) target = $region32
      $region31: #{tpu_custom_call.1} parent=5 // pred_region
        %s266 = ssub.s32 %s26, 1
        // Predicated region
        $region33: #{tpu_custom_call.1} parent=31 // pred_check
          %p267 = pneg %p47
        $region34: #{tpu_custom_call.1} parent=31 // pred_check_branch
          %269 = sbr.rel (%p267) target = $region36
        $region35: #{tpu_custom_call.1} parent=31 // pred_region
          %270 = dma.done [#allocation4], 16
        $region36: #{tpu_custom_call.1} parent=31 // pred_fallthru
          _
        %s271 = sand.u32 %s31, 1
        %s272 = scalar_lea.sflag [#allocation7], %s271
        %s273 = sand.u32 %s60, 1
        %s274 = smul.addr %s273, 6
        %s275 = scalar_lea.vmem [#allocation6], %s274
        // Predicated region
        $region37: #{tpu_custom_call.1} parent=31 // pred_check
          %p276 = pneg %p73
        $region38: #{tpu_custom_call.1} parent=31 // pred_check_branch
          %278 = sbr.rel (%p276) target = $region40
        $region39: #{tpu_custom_call.1} parent=31 // pred_region
          %279 = dma.done %s272, 96
        $region40: #{tpu_custom_call.1} parent=31 // pred_fallthru
          _
        // Predicated region
        $region41: #{tpu_custom_call.1} parent=31 // pred_check
          %p280 = pneg %p94
        $region42: #{tpu_custom_call.1} parent=31 // pred_check_branch
          %282 = sbr.rel (%p280) target = $region44
        $region43: #{tpu_custom_call.1} parent=31 // pred_region
          %283 = dma.done [#allocation7], 6144
        $region44: #{tpu_custom_call.1} parent=31 // pred_fallthru
          _
        %p284 = pneg %p47
        %p285 = pneg %p44
        %s286 = sand.u32 %s31, 1
        %s287 = scalar_lea.sflag [#allocation7], %s286
        %s288 = sand.u32 %s60, 1
        %s289 = smul.addr %s288, 6
        %s290 = scalar_lea.vmem [#allocation6], %s289
        %p291 = pneg %p73
        %p292 = pneg %p70
        %p293 = pneg %p94
        %p294 = pneg %p91
        %p295 = pneg %p120
        %p296 = pneg %p117
        %s297 = sand.u32 %s107, 1
        %s298 = scalar_lea.sflag [#allocation5], %s297
        %s299 = sand.u32 %s107, 1
        %s300 = scalar_lea.vmem [#allocation9], %s299
        %p301 = pneg %p146
        %p302 = pneg %p143
        %s303 = sand.u32 %s31, 1
        %s304 = scalar_lea.sflag [#allocation11], %s303
        %s305 = sand.u32 %s133, 1
        %s306 = scalar_lea.vmem [#allocation10], %s305
        %p307 = pneg %p172
        %p308 = pneg %p169
        %s309 = sand.u32 %s31, 1
        %s310 = scalar_lea.sflag [#allocation11], %s309
        %s311 = sand.u32 %s159, 1
        %s312 = scalar_lea.vmem [#allocation12], %s311
        %p313 = pneg %p198
        %p314 = pneg %p195
        %s315 = sand.u32 %s185, 1
        %s316 = scalar_lea.sflag [#allocation14], %s315
        %s317 = sand.u32 %s185, 1
        %s318 = scalar_lea.vmem [#allocation13], %s317
        %p319 = scmp.eq.s32.totalorder %s31, 0
        // Predicated region
        $region45: #{tpu_custom_call.1} parent=31 // pred_check
          %p320 = pneg %p319
        $region46: #{tpu_custom_call.1} parent=31 // pred_check_branch
          %322 = sbr.rel (%p320) target = $region48
        $region47: #{tpu_custom_call.1} parent=31 // pred_region
          %v323 = vld [vmem:[#allocation3] sm:$0x1]
          %324 = vst [vmem:[#allocation2] sm:$0x1] %v323
        $region48: #{tpu_custom_call.1} parent=31 // pred_fallthru
          _
        %v325 = vld [vmem:[#allocation2] sm:$0x1]
        %v326 = vld [vmem:[%s275] sm:$0x3f]
        %v327 = vld [vmem:[#allocation8] sm:$0xff]
        %v328 = vld [vmem:[#allocation8 + $0x8] sm:$0xff]
        %v329 = vld [vmem:[#allocation8 + $0x10] sm:$0xff]
        %v330 = vld [vmem:[#allocation8 + $0x18] sm:$0xff]
        %v331 = vld [vmem:[#allocation8 + $0x20] sm:$0xff]
        %v332 = vld [vmem:[#allocation8 + $0x28] sm:$0xff]
        %v333 = vld [vmem:[#allocation8 + $0x30] sm:$0xff]
        %v334 = vld [vmem:[#allocation8 + $0x38] sm:$0xff]
        %v335 = vld [vmem:[#allocation8 + $0x40] sm:$0xff]
        %v336 = vld [vmem:[#allocation8 + $0x48] sm:$0xff]
        %v337 = vld [vmem:[#allocation8 + $0x50] sm:$0xff]
        %v338 = vld [vmem:[#allocation8 + $0x58] sm:$0xff]
        %v339 = vld [vmem:[#allocation8 + $0x60] sm:$0xff]
        %v340 = vld [vmem:[#allocation8 + $0x68] sm:$0xff]
        %v341 = vld [vmem:[#allocation8 + $0x70] sm:$0xff]
        %v342 = vld [vmem:[#allocation8 + $0x78] sm:$0xff]
        %v343 = vld [vmem:[#allocation8 + $0x80] sm:$0xff]
        %v344 = vld [vmem:[#allocation8 + $0x88] sm:$0xff]
        %v345 = vld [vmem:[#allocation8 + $0x90] sm:$0xff]
        %v346 = vld [vmem:[#allocation8 + $0x98] sm:$0xff]
        %v347 = vld [vmem:[#allocation8 + $0xa0] sm:$0xff]
        %v348 = vld [vmem:[#allocation8 + $0xa8] sm:$0xff]
        %v349 = vld [vmem:[#allocation8 + $0xb0] sm:$0xff]
        %v350 = vld [vmem:[#allocation8 + $0xb8] sm:$0xff]
        %v351 = vld [vmem:[#allocation8 + $0xc0] sm:$0xff]
        %v352 = vld [vmem:[#allocation8 + $0xc8] sm:$0xff]
        %v353 = vld [vmem:[#allocation8 + $0xd0] sm:$0xff]
        %v354 = vld [vmem:[#allocation8 + $0xd8] sm:$0xff]
        %v355 = vld [vmem:[#allocation8 + $0xe0] sm:$0xff]
        %v356 = vld [vmem:[#allocation8 + $0xe8] sm:$0xff]
        %v357 = vld [vmem:[#allocation8 + $0xf0] sm:$0xff]
        %v358 = vld [vmem:[#allocation8 + $0xf8] sm:$0xff]
        %v359 = vld [vmem:[#allocation8 + $0x100] sm:$0xff]
        %v360 = vld [vmem:[#allocation8 + $0x108] sm:$0xff]
        %v361 = vld [vmem:[#allocation8 + $0x110] sm:$0xff]
        %v362 = vld [vmem:[#allocation8 + $0x118] sm:$0xff]
        %v363 = vld [vmem:[#allocation8 + $0x120] sm:$0xff]
        %v364 = vld [vmem:[#allocation8 + $0x128] sm:$0xff]
        %v365 = vld [vmem:[#allocation8 + $0x130] sm:$0xff]
        %v366 = vld [vmem:[#allocation8 + $0x138] sm:$0xff]
        %v367 = vld [vmem:[#allocation8 + $0x140] sm:$0xff]
        %v368 = vld [vmem:[#allocation8 + $0x148] sm:$0xff]
        %v369 = vld [vmem:[#allocation8 + $0x150] sm:$0xff]
        %v370 = vld [vmem:[#allocation8 + $0x158] sm:$0xff]
        %v371 = vld [vmem:[#allocation8 + $0x160] sm:$0xff]
        %v372 = vld [vmem:[#allocation8 + $0x168] sm:$0xff]
        %v373 = vld [vmem:[#allocation8 + $0x170] sm:$0xff]
        %v374 = vld [vmem:[#allocation8 + $0x178] sm:$0xff]
        %v375 = vand.u32 %v328, 4294901760
        %376 = vmatprep.subr.mxu0 %v375
        %v377 = vand.u32 %v327, 4294901760
        %378 = vmatpush1.msra.mxu0 %v377
        %v379 = vand.u32 %v331, 4294901760
        %380 = vmatprep.subr.mxu0 %v379
        %v381 = vand.u32 %v330, 4294901760
        %382 = vmatpush1.msra.mxu0 %v381
        %v383 = vand.u32 %v334, 4294901760
        %384 = vmatprep.subr.mxu0 %v383
        %v385 = vand.u32 %v333, 4294901760
        %386 = vmatpush1.msra.mxu0 %v385
        %v387 = vand.u32 %v337, 4294901760
        %388 = vmatprep.subr.mxu0 %v387
        %v389 = vand.u32 %v336, 4294901760
        %390 = vmatpush1.msra.mxu0 %v389
        %v391 = vand.u32 %v340, 4294901760
        %392 = vmatprep.subr.mxu0 %v391
        %v393 = vand.u32 %v339, 4294901760
        %394 = vmatpush1.msra.mxu0 %v393
        %v395 = vand.u32 %v343, 4294901760
        %396 = vmatprep.subr.mxu0 %v395
        %v397 = vand.u32 %v342, 4294901760
        %398 = vmatpush1.msra.mxu0 %v397
        %v399 = vand.u32 %v346, 4294901760
        %400 = vmatprep.subr.mxu0 %v399
        %v401 = vand.u32 %v345, 4294901760
        %402 = vmatpush1.msra.mxu0 %v401
        %v403 = vand.u32 %v349, 4294901760
        %404 = vmatprep.subr.mxu0 %v403
        %v405 = vand.u32 %v348, 4294901760
        %406 = vmatpush1.msra.mxu0 %v405
        %v407 = vand.u32 %v352, 4294901760
        %408 = vmatprep.subr.mxu0 %v407
        %v409 = vand.u32 %v351, 4294901760
        %410 = vmatpush1.msra.mxu0 %v409
        %v411 = vand.u32 %v355, 4294901760
        %412 = vmatprep.subr.mxu0 %v411
        %v413 = vand.u32 %v354, 4294901760
        %414 = vmatpush1.msra.mxu0 %v413
        %v415 = vand.u32 %v358, 4294901760
        %416 = vmatprep.subr.mxu0 %v415
        %v417 = vand.u32 %v357, 4294901760
        %418 = vmatpush1.msra.mxu0 %v417
        %v419 = vand.u32 %v361, 4294901760
        %420 = vmatprep.subr.mxu0 %v419
        %v421 = vand.u32 %v360, 4294901760
        %422 = vmatpush1.msra.mxu0 %v421
        %v423 = vand.u32 %v364, 4294901760
        %424 = vmatprep.subr.mxu0 %v423
        %v425 = vand.u32 %v363, 4294901760
        %426 = vmatpush1.msra.mxu0 %v425
        %v427 = vand.u32 %v367, 4294901760
        %428 = vmatprep.subr.mxu0 %v427
        %v429 = vand.u32 %v366, 4294901760
        %430 = vmatpush1.msra.mxu0 %v429
        %v431 = vand.u32 %v370, 4294901760
        %432 = vmatprep.subr.mxu0 %v431
        %v433 = vand.u32 %v369, 4294901760
        %434 = vmatpush1.msra.mxu0 %v433
        %v435 = vand.u32 %v373, 4294901760
        %436 = vmatprep.subr.mxu0 %v435
        %v437 = vand.u32 %v372, 4294901760
        %438 = vmatpush1.msra.mxu0 %v437
        %439 = vmatprep.subr.mxu0 0.0
        %440 = vmatpush1.msra.mxu0 0.0
        %441 = vmatprep.subr.mxu0 0.0
        %442 = vmatpush1.msra.mxu0 0.0
        %443 = vmatprep.subr.mxu0 0.0
        %444 = vmatpush1.msra.mxu0 0.0
        %445 = vmatprep.subr.mxu0 0.0
        %446 = vmatpush1.msra.mxu0 0.0
        %447 = vmatprep.subr.mxu0 0.0
        %448 = vmatpush1.msra.mxu0 0.0
        %449 = vmatprep.subr.mxu0 0.0
        %450 = vmatpush1.msra.mxu0 0.0
        %451 = vmatprep.subr.mxu0 0.0
        %452 = vmatpush1.msra.mxu0 0.0
        %453 = vmatprep.subr.mxu0 0.0
        %454 = vmatpush1.msra.mxu0 0.0
        %455 = vmatprep.subr.mxu0 0.0
        %456 = vmatpush1.msra.mxu0 0.0
        %457 = vmatprep.subr.mxu0 0.0
        %458 = vmatpush1.msra.mxu0 0.0
        %459 = vmatprep.subr.mxu0 0.0
        %460 = vmatpush1.msra.mxu0 0.0
        %461 = vmatprep.subr.mxu0 0.0
        %462 = vmatpush1.msra.mxu0 0.0
        %463 = vmatprep.subr.mxu0 0.0
        %464 = vmatpush1.msra.mxu0 0.0
        %465 = vmatprep.subr.mxu0 0.0
        %466 = vmatpush1.msra.mxu0 0.0
        %467 = vmatprep.subr.mxu0 0.0
        %468 = vmatpush1.msra.mxu0 0.0
        %469 = vmatprep.subr.mxu0 0.0
        %470 = vmatpush1.msra.mxu0 0.0
        %471 = vmatprep.mubr.f32.mxu0 0.0
        %v472 = vand.u32 %v325, 4294901760
        %v473 = vsub.f32 %v325, %v472
        %v474 = vand.u32 %v473, 4294901760
        %v475 = vsub.f32 %v473, %v474
        %v476 = vand.u32 %v475, 4294901760
        %477 = vmatmul.mubr.f32.gmra.mrb[0].mxu0 %v476
        %v478 = vpop.f32.mrb[0].mxu0
        %v479 = vadd.f32 0.0, %v478
        %v480 = vpop.f32.mrb[0].mxu0
        %v481 = vadd.f32 0.0, %v480
        %482 = vdwg.mxu0
        %v483 = vand.u32 %v328, 4294901760
        %v484 = vsub.f32 %v328, %v483
        %v485 = vand.u32 %v484, 4294901760
        %v486 = vsub.f32 %v484, %v485
        %v487 = vand.u32 %v486, 4294901760
        %488 = vmatprep.subr.mxu0 %v487
        %v489 = vand.u32 %v327, 4294901760
        %v490 = vsub.f32 %v327, %v489
        %v491 = vand.u32 %v490, 4294901760
        %v492 = vsub.f32 %v490, %v491
        %v493 = vand.u32 %v492, 4294901760
        %494 = vmatpush1.msra.mxu0 %v493
        %v495 = vand.u32 %v331, 4294901760
        %v496 = vsub.f32 %v331, %v495
        %v497 = vand.u32 %v496, 4294901760
        %v498 = vsub.f32 %v496, %v497
        %v499 = vand.u32 %v498, 4294901760
        %500 = vmatprep.subr.mxu0 %v499
        %v501 = vand.u32 %v330, 4294901760
        %v502 = vsub.f32 %v330, %v501
        %v503 = vand.u32 %v502, 4294901760
        %v504 = vsub.f32 %v502, %v503
        %v505 = vand.u32 %v504, 4294901760
        %506 = vmatpush1.msra.mxu0 %v505
        %v507 = vand.u32 %v334, 4294901760
        %v508 = vsub.f32 %v334, %v507
        %v509 = vand.u32 %v508, 4294901760
        %v510 = vsub.f32 %v508, %v509
        %v511 = vand.u32 %v510, 4294901760
        %512 = vmatprep.subr.mxu0 %v511
        %v513 = vand.u32 %v333, 4294901760
        %v514 = vsub.f32 %v333, %v513
        %v515 = vand.u32 %v514, 4294901760
        %v516 = vsub.f32 %v514, %v515
        %v517 = vand.u32 %v516, 4294901760
        %518 = vmatpush1.msra.mxu0 %v517
        %v519 = vand.u32 %v337, 4294901760
        %v520 = vsub.f32 %v337, %v519
        %v521 = vand.u32 %v520, 4294901760
        %v522 = vsub.f32 %v520, %v521
        %v523 = vand.u32 %v522, 4294901760
        %524 = vmatprep.subr.mxu0 %v523
        %v525 = vand.u32 %v336, 4294901760
        %v526 = vsub.f32 %v336, %v525
        %v527 = vand.u32 %v526, 4294901760
        %v528 = vsub.f32 %v526, %v527
        %v529 = vand.u32 %v528, 4294901760
        %530 = vmatpush1.msra.mxu0 %v529
        %v531 = vand.u32 %v340, 4294901760
        %v532 = vsub.f32 %v340, %v531
        %v533 = vand.u32 %v532, 4294901760
        %v534 = vsub.f32 %v532, %v533
        %v535 = vand.u32 %v534, 4294901760
        %536 = vmatprep.subr.mxu0 %v535
        %v537 = vand.u32 %v339, 4294901760
        %v538 = vsub.f32 %v339, %v537
        %v539 = vand.u32 %v538, 4294901760
        %v540 = vsub.f32 %v538, %v539
        %v541 = vand.u32 %v540, 4294901760
        %542 = vmatpush1.msra.mxu0 %v541
        %v543 = vand.u32 %v343, 4294901760
        %v544 = vsub.f32 %v343, %v543
        %v545 = vand.u32 %v544, 4294901760
        %v546 = vsub.f32 %v544, %v545
        %v547 = vand.u32 %v546, 4294901760
        %548 = vmatprep.subr.mxu0 %v547
        %v549 = vand.u32 %v342, 4294901760
        %v550 = vsub.f32 %v342, %v549
        %v551 = vand.u32 %v550, 4294901760
        %v552 = vsub.f32 %v550, %v551
        %v553 = vand.u32 %v552, 4294901760
        %554 = vmatpush1.msra.mxu0 %v553
        %v555 = vand.u32 %v346, 4294901760
        %v556 = vsub.f32 %v346, %v555
        %v557 = vand.u32 %v556, 4294901760
        %v558 = vsub.f32 %v556, %v557
        %v559 = vand.u32 %v558, 4294901760
        %560 = vmatprep.subr.mxu0 %v559
        %v561 = vand.u32 %v345, 4294901760
        %v562 = vsub.f32 %v345, %v561
        %v563 = vand.u32 %v562, 4294901760
        %v564 = vsub.f32 %v562, %v563
        %v565 = vand.u32 %v564, 4294901760
        %566 = vmatpush1.msra.mxu0 %v565
        %v567 = vand.u32 %v349, 4294901760
        %v568 = vsub.f32 %v349, %v567
        %v569 = vand.u32 %v568, 4294901760
        %v570 = vsub.f32 %v568, %v569
        %v571 = vand.u32 %v570, 4294901760
        %572 = vmatprep.subr.mxu0 %v571
        %v573 = vand.u32 %v348, 4294901760
        %v574 = vsub.f32 %v348, %v573
        %v575 = vand.u32 %v574, 4294901760
        %v576 = vsub.f32 %v574, %v575
        %v577 = vand.u32 %v576, 4294901760
        %578 = vmatpush1.msra.mxu0 %v577
        %v579 = vand.u32 %v352, 4294901760
        %v580 = vsub.f32 %v352, %v579
        %v581 = vand.u32 %v580, 4294901760
        %v582 = vsub.f32 %v580, %v581
        %v583 = vand.u32 %v582, 4294901760
        %584 = vmatprep.subr.mxu0 %v583
        %v585 = vand.u32 %v351, 4294901760
        %v586 = vsub.f32 %v351, %v585
        %v587 = vand.u32 %v586, 4294901760
        %v588 = vsub.f32 %v586, %v587
        %v589 = vand.u32 %v588, 4294901760
        %590 = vmatpush1.msra.mxu0 %v589
        %v591 = vand.u32 %v355, 4294901760
        %v592 = vsub.f32 %v355, %v591
        %v593 = vand.u32 %v592, 4294901760
        %v594 = vsub.f32 %v592, %v593
        %v595 = vand.u32 %v594, 4294901760
        %596 = vmatprep.subr.mxu0 %v595
        %v597 = vand.u32 %v354, 4294901760
        %v598 = vsub.f32 %v354, %v597
        %v599 = vand.u32 %v598, 4294901760
        %v600 = vsub.f32 %v598, %v599
        %v601 = vand.u32 %v600, 4294901760
        %602 = vmatpush1.msra.mxu0 %v601
        %v603 = vand.u32 %v358, 4294901760
        %v604 = vsub.f32 %v358, %v603
        %v605 = vand.u32 %v604, 4294901760
        %v606 = vsub.f32 %v604, %v605
        %v607 = vand.u32 %v606, 4294901760
        %608 = vmatprep.subr.mxu0 %v607
        %v609 = vand.u32 %v357, 4294901760
        %v610 = vsub.f32 %v357, %v609
        %v611 = vand.u32 %v610, 4294901760
        %v612 = vsub.f32 %v610, %v611
        %v613 = vand.u32 %v612, 4294901760
        %614 = vmatpush1.msra.mxu0 %v613
        %v615 = vand.u32 %v361, 4294901760
        %v616 = vsub.f32 %v361, %v615
        %v617 = vand.u32 %v616, 4294901760
        %v618 = vsub.f32 %v616, %v617
        %v619 = vand.u32 %v618, 4294901760
        %620 = vmatprep.subr.mxu0 %v619
        %v621 = vand.u32 %v360, 4294901760
        %v622 = vsub.f32 %v360, %v621
        %v623 = vand.u32 %v622, 4294901760
        %v624 = vsub.f32 %v622, %v623
        %v625 = vand.u32 %v624, 4294901760
        %626 = vmatpush1.msra.mxu0 %v625
        %v627 = vand.u32 %v364, 4294901760
        %v628 = vsub.f32 %v364, %v627
        %v629 = vand.u32 %v628, 4294901760
        %v630 = vsub.f32 %v628, %v629
        %v631 = vand.u32 %v630, 4294901760
        %632 = vmatprep.subr.mxu0 %v631
        %v633 = vand.u32 %v363, 4294901760
        %v634 = vsub.f32 %v363, %v633
        %v635 = vand.u32 %v634, 4294901760
        %v636 = vsub.f32 %v634, %v635
        %v637 = vand.u32 %v636, 4294901760
        %638 = vmatpush1.msra.mxu0 %v637
        %v639 = vand.u32 %v367, 4294901760
        %v640 = vsub.f32 %v367, %v639
        %v641 = vand.u32 %v640, 4294901760
        %v642 = vsub.f32 %v640, %v641
        %v643 = vand.u32 %v642, 4294901760
        %644 = vmatprep.subr.mxu0 %v643
        %v645 = vand.u32 %v366, 4294901760
        %v646 = vsub.f32 %v366, %v645
        %v647 = vand.u32 %v646, 4294901760
        %v648 = vsub.f32 %v646, %v647
        %v649 = vand.u32 %v648, 4294901760
        %650 = vmatpush1.msra.mxu0 %v649
        %v651 = vand.u32 %v370, 4294901760
        %v652 = vsub.f32 %v370, %v651
        %v653 = vand.u32 %v652, 4294901760
        %v654 = vsub.f32 %v652, %v653
        %v655 = vand.u32 %v654, 4294901760
        %656 = vmatprep.subr.mxu0 %v655
        %v657 = vand.u32 %v369, 4294901760
        %v658 = vsub.f32 %v369, %v657
        %v659 = vand.u32 %v658, 4294901760
        %v660 = vsub.f32 %v658, %v659
        %v661 = vand.u32 %v660, 4294901760
        %662 = vmatpush1.msra.mxu0 %v661
        %v663 = vand.u32 %v373, 4294901760
        %v664 = vsub.f32 %v373, %v663
        %v665 = vand.u32 %v664, 4294901760
        %v666 = vsub.f32 %v664, %v665
        %v667 = vand.u32 %v666, 4294901760
        %668 = vmatprep.subr.mxu0 %v667
        %v669 = vand.u32 %v372, 4294901760
        %v670 = vsub.f32 %v372, %v669
        %v671 = vand.u32 %v670, 4294901760
        %v672 = vsub.f32 %v670, %v671
        %v673 = vand.u32 %v672, 4294901760
        %674 = vmatpush1.msra.mxu0 %v673
        %675 = vmatprep.subr.mxu0 0.0
        %676 = vmatpush1.msra.mxu0 0.0
        %677 = vmatprep.subr.mxu0 0.0
        %678 = vmatpush1.msra.mxu0 0.0
        %679 = vmatprep.subr.mxu0 0.0
        %680 = vmatpush1.msra.mxu0 0.0
        %681 = vmatprep.subr.mxu0 0.0
        %682 = vmatpush1.msra.mxu0 0.0
        %683 = vmatprep.subr.mxu0 0.0
        %684 = vmatpush1.msra.mxu0 0.0
        %685 = vmatprep.subr.mxu0 0.0
        %686 = vmatpush1.msra.mxu0 0.0
        %687 = vmatprep.subr.mxu0 0.0
        %688 = vmatpush1.msra.mxu0 0.0
        %689 = vmatprep.subr.mxu0 0.0
        %690 = vmatpush1.msra.mxu0 0.0
        %691 = vmatprep.subr.mxu0 0.0
        %692 = vmatpush1.msra.mxu0 0.0
        %693 = vmatprep.subr.mxu0 0.0
        %694 = vmatpush1.msra.mxu0 0.0
        %695 = vmatprep.subr.mxu0 0.0
        %696 = vmatpush1.msra.mxu0 0.0
        %697 = vmatprep.subr.mxu0 0.0
        %698 = vmatpush1.msra.mxu0 0.0
        %699 = vmatprep.subr.mxu0 0.0
        %700 = vmatpush1.msra.mxu0 0.0
        %701 = vmatprep.subr.mxu0 0.0
        %702 = vmatpush1.msra.mxu0 0.0
        %703 = vmatprep.subr.mxu0 0.0
        %704 = vmatpush1.msra.mxu0 0.0
        %705 = vmatprep.subr.mxu0 0.0
        %706 = vmatpush1.msra.mxu0 0.0
        %707 = vmatprep.mubr.f32.mxu0 0.0
        %v708 = vand.u32 %v325, 4294901760
        %709 = vmatmul.mubr.f32.gmra.mrb[0].mxu0 %v708
        %v710 = vpop.f32.mrb[0].mxu0
        %v711 = vadd.f32 %v479, %v710
        %v712 = vpop.f32.mrb[0].mxu0
        %v713 = vadd.f32 %v481, %v712
        %714 = vdwg.mxu0
        %v715 = vand.u32 %v328, 4294901760
        %v716 = vsub.f32 %v328, %v715
        %717 = vmatprep.subr.mxu0 %v716
        %v718 = vand.u32 %v327, 4294901760
        %v719 = vsub.f32 %v327, %v718
        %720 = vmatpush1.msra.mxu0 %v719
        %v721 = vand.u32 %v331, 4294901760
        %v722 = vsub.f32 %v331, %v721
        %723 = vmatprep.subr.mxu0 %v722
        %v724 = vand.u32 %v330, 4294901760
        %v725 = vsub.f32 %v330, %v724
        %726 = vmatpush1.msra.mxu0 %v725
        %v727 = vand.u32 %v334, 4294901760
        %v728 = vsub.f32 %v334, %v727
        %729 = vmatprep.subr.mxu0 %v728
        %v730 = vand.u32 %v333, 4294901760
        %v731 = vsub.f32 %v333, %v730
        %732 = vmatpush1.msra.mxu0 %v731
        %v733 = vand.u32 %v337, 4294901760
        %v734 = vsub.f32 %v337, %v733
        %735 = vmatprep.subr.mxu0 %v734
        %v736 = vand.u32 %v336, 4294901760
        %v737 = vsub.f32 %v336, %v736
        %738 = vmatpush1.msra.mxu0 %v737
        %v739 = vand.u32 %v340, 4294901760
        %v740 = vsub.f32 %v340, %v739
        %741 = vmatprep.subr.mxu0 %v740
        %v742 = vand.u32 %v339, 4294901760
        %v743 = vsub.f32 %v339, %v742
        %744 = vmatpush1.msra.mxu0 %v743
        %v745 = vand.u32 %v343, 4294901760
        %v746 = vsub.f32 %v343, %v745
        %747 = vmatprep.subr.mxu0 %v746
        %v748 = vand.u32 %v342, 4294901760
        %v749 = vsub.f32 %v342, %v748
        %750 = vmatpush1.msra.mxu0 %v749
        %v751 = vand.u32 %v346, 4294901760
        %v752 = vsub.f32 %v346, %v751
        %753 = vmatprep.subr.mxu0 %v752
        %v754 = vand.u32 %v345, 4294901760
        %v755 = vsub.f32 %v345, %v754
        %756 = vmatpush1.msra.mxu0 %v755
        %v757 = vand.u32 %v349, 4294901760
        %v758 = vsub.f32 %v349, %v757
        %759 = vmatprep.subr.mxu0 %v758
        %v760 = vand.u32 %v348, 4294901760
        %v761 = vsub.f32 %v348, %v760
        %762 = vmatpush1.msra.mxu0 %v761
        %v763 = vand.u32 %v352, 4294901760
        %v764 = vsub.f32 %v352, %v763
        %765 = vmatprep.subr.mxu0 %v764
        %v766 = vand.u32 %v351, 4294901760
        %v767 = vsub.f32 %v351, %v766
        %768 = vmatpush1.msra.mxu0 %v767
        %v769 = vand.u32 %v355, 4294901760
        %v770 = vsub.f32 %v355, %v769
        %771 = vmatprep.subr.mxu0 %v770
        %v772 = vand.u32 %v354, 4294901760
        %v773 = vsub.f32 %v354, %v772
        %774 = vmatpush1.msra.mxu0 %v773
        %v775 = vand.u32 %v358, 4294901760
        %v776 = vsub.f32 %v358, %v775
        %777 = vmatprep.subr.mxu0 %v776
        %v778 = vand.u32 %v357, 4294901760
        %v779 = vsub.f32 %v357, %v778
        %780 = vmatpush1.msra.mxu0 %v779
        %v781 = vand.u32 %v361, 4294901760
        %v782 = vsub.f32 %v361, %v781
        %783 = vmatprep.subr.mxu0 %v782
        %v784 = vand.u32 %v360, 4294901760
        %v785 = vsub.f32 %v360, %v784
        %786 = vmatpush1.msra.mxu0 %v785
        %v787 = vand.u32 %v364, 4294901760
        %v788 = vsub.f32 %v364, %v787
        %789 = vmatprep.subr.mxu0 %v788
        %v790 = vand.u32 %v363, 4294901760
        %v791 = vsub.f32 %v363, %v790
        %792 = vmatpush1.msra.mxu0 %v791
        %v793 = vand.u32 %v367, 4294901760
        %v794 = vsub.f32 %v367, %v793
        %795 = vmatprep.subr.mxu0 %v794
        %v796 = vand.u32 %v366, 4294901760
        %v797 = vsub.f32 %v366, %v796
        %798 = vmatpush1.msra.mxu0 %v797
        %v799 = vand.u32 %v370, 4294901760
        %v800 = vsub.f32 %v370, %v799
        %801 = vmatprep.subr.mxu0 %v800
        %v802 = vand.u32 %v369, 4294901760
        %v803 = vsub.f32 %v369, %v802
        %804 = vmatpush1.msra.mxu0 %v803
        %v805 = vand.u32 %v373, 4294901760
        %v806 = vsub.f32 %v373, %v805
        %807 = vmatprep.subr.mxu0 %v806
        %v808 = vand.u32 %v372, 4294901760
        %v809 = vsub.f32 %v372, %v808
        %810 = vmatpush1.msra.mxu0 %v809
        %811 = vmatprep.subr.mxu0 0.0
        %812 = vmatpush1.msra.mxu0 0.0
        %813 = vmatprep.subr.mxu0 0.0
        %814 = vmatpush1.msra.mxu0 0.0
        %815 = vmatprep.subr.mxu0 0.0
        %816 = vmatpush1.msra.mxu0 0.0
        %817 = vmatprep.subr.mxu0 0.0
        %818 = vmatpush1.msra.mxu0 0.0
        %819 = vmatprep.subr.mxu0 0.0
        %820 = vmatpush1.msra.mxu0 0.0
        %821 = vmatprep.subr.mxu0 0.0
        %822 = vmatpush1.msra.mxu0 0.0
        %823 = vmatprep.subr.mxu0 0.0
        %824 = vmatpush1.msra.mxu0 0.0
        %825 = vmatprep.subr.mxu0 0.0
        %826 = vmatpush1.msra.mxu0 0.0
        %827 = vmatprep.subr.mxu0 0.0
        %828 = vmatpush1.msra.mxu0 0.0
        %829 = vmatprep.subr.mxu0 0.0
        %830 = vmatpush1.msra.mxu0 0.0
        %831 = vmatprep.subr.mxu0 0.0
        %832 = vmatpush1.msra.mxu0 0.0
        %833 = vmatprep.subr.mxu0 0.0
        %834 = vmatpush1.msra.mxu0 0.0
        %835 = vmatprep.subr.mxu0 0.0
        %836 = vmatpush1.msra.mxu0 0.0
        %837 = vmatprep.subr.mxu0 0.0
        %838 = vmatpush1.msra.mxu0 0.0
        %839 = vmatprep.subr.mxu0 0.0
        %840 = vmatpush1.msra.mxu0 0.0
        %841 = vmatprep.subr.mxu0 0.0
        %842 = vmatpush1.msra.mxu0 0.0
        %843 = vmatprep.mubr.f32.mxu0 0.0
        %v844 = vand.u32 %v325, 4294901760
        %v845 = vsub.f32 %v325, %v844
        %846 = vmatmul.mubr.f32.gmra.mrb[0].mxu0 %v845
        %v847 = vpop.f32.mrb[0].mxu0
        %v848 = vadd.f32 %v711, %v847
        %v849 = vpop.f32.mrb[0].mxu0
        %v850 = vadd.f32 %v713, %v849
        %851 = vdwg.mxu0
        %v852 = vand.u32 %v328, 4294901760
        %853 = vmatprep.subr.mxu0 %v852
        %v854 = vand.u32 %v327, 4294901760
        %855 = vmatpush1.msra.mxu0 %v854
        %v856 = vand.u32 %v331, 4294901760
        %857 = vmatprep.subr.mxu0 %v856
        %v858 = vand.u32 %v330, 4294901760
        %859 = vmatpush1.msra.mxu0 %v858
        %v860 = vand.u32 %v334, 4294901760
        %861 = vmatprep.subr.mxu0 %v860
        %v862 = vand.u32 %v333, 4294901760
        %863 = vmatpush1.msra.mxu0 %v862
        %v864 = vand.u32 %v337, 4294901760
        %865 = vmatprep.subr.mxu0 %v864
        %v866 = vand.u32 %v336, 4294901760
        %867 = vmatpush1.msra.mxu0 %v866
        %v868 = vand.u32 %v340, 4294901760
        %869 = vmatprep.subr.mxu0 %v868
        %v870 = vand.u32 %v339, 4294901760
        %871 = vmatpush1.msra.mxu0 %v870
        %v872 = vand.u32 %v343, 4294901760
        %873 = vmatprep.subr.mxu0 %v872
        %v874 = vand.u32 %v342, 4294901760
        %875 = vmatpush1.msra.mxu0 %v874
        %v876 = vand.u32 %v346, 4294901760
        %877 = vmatprep.subr.mxu0 %v876
        %v878 = vand.u32 %v345, 4294901760
        %879 = vmatpush1.msra.mxu0 %v878
        %v880 = vand.u32 %v349, 4294901760
        %881 = vmatprep.subr.mxu0 %v880
        %v882 = vand.u32 %v348, 4294901760
        %883 = vmatpush1.msra.mxu0 %v882
        %v884 = vand.u32 %v352, 4294901760
        %885 = vmatprep.subr.mxu0 %v884
        %v886 = vand.u32 %v351, 4294901760
        %887 = vmatpush1.msra.mxu0 %v886
        %v888 = vand.u32 %v355, 4294901760
        %889 = vmatprep.subr.mxu0 %v888
        %v890 = vand.u32 %v354, 4294901760
        %891 = vmatpush1.msra.mxu0 %v890
        %v892 = vand.u32 %v358, 4294901760
        %893 = vmatprep.subr.mxu0 %v892
        %v894 = vand.u32 %v357, 4294901760
        %895 = vmatpush1.msra.mxu0 %v894
        %v896 = vand.u32 %v361, 4294901760
        %897 = vmatprep.subr.mxu0 %v896
        %v898 = vand.u32 %v360, 4294901760
        %899 = vmatpush1.msra.mxu0 %v898
        %v900 = vand.u32 %v364, 4294901760
        %901 = vmatprep.subr.mxu0 %v900
        %v902 = vand.u32 %v363, 4294901760
        %903 = vmatpush1.msra.mxu0 %v902
        %v904 = vand.u32 %v367, 4294901760
        %905 = vmatprep.subr.mxu0 %v904
        %v906 = vand.u32 %v366, 4294901760
        %907 = vmatpush1.msra.mxu0 %v906
        %v908 = vand.u32 %v370, 4294901760
        %909 = vmatprep.subr.mxu0 %v908
        %v910 = vand.u32 %v369, 4294901760
        %911 = vmatpush1.msra.mxu0 %v910
        %v912 = vand.u32 %v373, 4294901760
        %913 = vmatprep.subr.mxu0 %v912
        %v914 = vand.u32 %v372, 4294901760
        %915 = vmatpush1.msra.mxu0 %v914
        %916 = vmatprep.subr.mxu0 0.0
        %917 = vmatpush1.msra.mxu0 0.0
        %918 = vmatprep.subr.mxu0 0.0
        %919 = vmatpush1.msra.mxu0 0.0
        %920 = vmatprep.subr.mxu0 0.0
        %921 = vmatpush1.msra.mxu0 0.0
        %922 = vmatprep.subr.mxu0 0.0
        %923 = vmatpush1.msra.mxu0 0.0
        %924 = vmatprep.subr.mxu0 0.0
        %925 = vmatpush1.msra.mxu0 0.0
        %926 = vmatprep.subr.mxu0 0.0
        %927 = vmatpush1.msra.mxu0 0.0
        %928 = vmatprep.subr.mxu0 0.0
        %929 = vmatpush1.msra.mxu0 0.0
        %930 = vmatprep.subr.mxu0 0.0
        %931 = vmatpush1.msra.mxu0 0.0
        %932 = vmatprep.subr.mxu0 0.0
        %933 = vmatpush1.msra.mxu0 0.0
        %934 = vmatprep.subr.mxu0 0.0
        %935 = vmatpush1.msra.mxu0 0.0
        %936 = vmatprep.subr.mxu0 0.0
        %937 = vmatpush1.msra.mxu0 0.0
        %938 = vmatprep.subr.mxu0 0.0
        %939 = vmatpush1.msra.mxu0 0.0
        %940 = vmatprep.subr.mxu0 0.0
        %941 = vmatpush1.msra.mxu0 0.0
        %942 = vmatprep.subr.mxu0 0.0
        %943 = vmatpush1.msra.mxu0 0.0
        %944 = vmatprep.subr.mxu0 0.0
        %945 = vmatpush1.msra.mxu0 0.0
        %946 = vmatprep.subr.mxu0 0.0
        %947 = vmatpush1.msra.mxu0 0.0
        %948 = vmatprep.mubr.f32.mxu0 0.0
        %v949 = vand.u32 %v325, 4294901760
        %v950 = vsub.f32 %v325, %v949
        %v951 = vand.u32 %v950, 4294901760
        %952 = vmatmul.mubr.f32.gmra.mrb[0].mxu0 %v951
        %v953 = vpop.f32.mrb[0].mxu0
        %v954 = vadd.f32 %v848, %v953
        %v955 = vpop.f32.mrb[0].mxu0
        %v956 = vadd.f32 %v850, %v955
        %957 = vdwg.mxu0
        %v958 = vand.u32 %v328, 4294901760
        %v959 = vsub.f32 %v328, %v958
        %v960 = vand.u32 %v959, 4294901760
        %961 = vmatprep.subr.mxu0 %v960
        %v962 = vand.u32 %v327, 4294901760
        %v963 = vsub.f32 %v327, %v962
        %v964 = vand.u32 %v963, 4294901760
        %965 = vmatpush1.msra.mxu0 %v964
        %v966 = vand.u32 %v331, 4294901760
        %v967 = vsub.f32 %v331, %v966
        %v968 = vand.u32 %v967, 4294901760
        %969 = vmatprep.subr.mxu0 %v968
        %v970 = vand.u32 %v330, 4294901760
        %v971 = vsub.f32 %v330, %v970
        %v972 = vand.u32 %v971, 4294901760
        %973 = vmatpush1.msra.mxu0 %v972
        %v974 = vand.u32 %v334, 4294901760
        %v975 = vsub.f32 %v334, %v974
        %v976 = vand.u32 %v975, 4294901760
        %977 = vmatprep.subr.mxu0 %v976
        %v978 = vand.u32 %v333, 4294901760
        %v979 = vsub.f32 %v333, %v978
        %v980 = vand.u32 %v979, 4294901760
        %981 = vmatpush1.msra.mxu0 %v980
        %v982 = vand.u32 %v337, 4294901760
        %v983 = vsub.f32 %v337, %v982
        %v984 = vand.u32 %v983, 4294901760
        %985 = vmatprep.subr.mxu0 %v984
        %v986 = vand.u32 %v336, 4294901760
        %v987 = vsub.f32 %v336, %v986
        %v988 = vand.u32 %v987, 4294901760
        %989 = vmatpush1.msra.mxu0 %v988
        %v990 = vand.u32 %v340, 4294901760
        %v991 = vsub.f32 %v340, %v990
        %v992 = vand.u32 %v991, 4294901760
        %993 = vmatprep.subr.mxu0 %v992
        %v994 = vand.u32 %v339, 4294901760
        %v995 = vsub.f32 %v339, %v994
        %v996 = vand.u32 %v995, 4294901760
        %997 = vmatpush1.msra.mxu0 %v996
        %v998 = vand.u32 %v343, 4294901760
        %v999 = vsub.f32 %v343, %v998
        %v1000 = vand.u32 %v999, 4294901760
        %1001 = vmatprep.subr.mxu0 %v1000
        %v1002 = vand.u32 %v342, 4294901760
        %v1003 = vsub.f32 %v342, %v1002
        %v1004 = vand.u32 %v1003, 4294901760
        %1005 = vmatpush1.msra.mxu0 %v1004
        %v1006 = vand.u32 %v346, 4294901760
        %v1007 = vsub.f32 %v346, %v1006
        %v1008 = vand.u32 %v1007, 4294901760
        %1009 = vmatprep.subr.mxu0 %v1008
        %v1010 = vand.u32 %v345, 4294901760
        %v1011 = vsub.f32 %v345, %v1010
        %v1012 = vand.u32 %v1011, 4294901760
        %1013 = vmatpush1.msra.mxu0 %v1012
        %v1014 = vand.u32 %v349, 4294901760
        %v1015 = vsub.f32 %v349, %v1014
        %v1016 = vand.u32 %v1015, 4294901760
        %1017 = vmatprep.subr.mxu0 %v1016
        %v1018 = vand.u32 %v348, 4294901760
        %v1019 = vsub.f32 %v348, %v1018
        %v1020 = vand.u32 %v1019, 4294901760
        %1021 = vmatpush1.msra.mxu0 %v1020
        %v1022 = vand.u32 %v352, 4294901760
        %v1023 = vsub.f32 %v352, %v1022
        %v1024 = vand.u32 %v1023, 4294901760
        %1025 = vmatprep.subr.mxu0 %v1024
        %v1026 = vand.u32 %v351, 4294901760
        %v1027 = vsub.f32 %v351, %v1026
        %v1028 = vand.u32 %v1027, 4294901760
        %1029 = vmatpush1.msra.mxu0 %v1028
        %v1030 = vand.u32 %v355, 4294901760
        %v1031 = vsub.f32 %v355, %v1030
        %v1032 = vand.u32 %v1031, 4294901760
        %1033 = vmatprep.subr.mxu0 %v1032
        %v1034 = vand.u32 %v354, 4294901760
        %v1035 = vsub.f32 %v354, %v1034
        %v1036 = vand.u32 %v1035, 4294901760
        %1037 = vmatpush1.msra.mxu0 %v1036
        %v1038 = vand.u32 %v358, 4294901760
        %v1039 = vsub.f32 %v358, %v1038
        %v1040 = vand.u32 %v1039, 4294901760
        %1041 = vmatprep.subr.mxu0 %v1040
        %v1042 = vand.u32 %v357, 4294901760
        %v1043 = vsub.f32 %v357, %v1042
        %v1044 = vand.u32 %v1043, 4294901760
        %1045 = vmatpush1.msra.mxu0 %v1044
        %v1046 = vand.u32 %v361, 4294901760
        %v1047 = vsub.f32 %v361, %v1046
        %v1048 = vand.u32 %v1047, 4294901760
        %1049 = vmatprep.subr.mxu0 %v1048
        %v1050 = vand.u32 %v360, 4294901760
        %v1051 = vsub.f32 %v360, %v1050
        %v1052 = vand.u32 %v1051, 4294901760
        %1053 = vmatpush1.msra.mxu0 %v1052
        %v1054 = vand.u32 %v364, 4294901760
        %v1055 = vsub.f32 %v364, %v1054
        %v1056 = vand.u32 %v1055, 4294901760
        %1057 = vmatprep.subr.mxu0 %v1056
        %v1058 = vand.u32 %v363, 4294901760
        %v1059 = vsub.f32 %v363, %v1058
        %v1060 = vand.u32 %v1059, 4294901760
        %1061 = vmatpush1.msra.mxu0 %v1060
        %v1062 = vand.u32 %v367, 4294901760
        %v1063 = vsub.f32 %v367, %v1062
        %v1064 = vand.u32 %v1063, 4294901760
        %1065 = vmatprep.subr.mxu0 %v1064
        %v1066 = vand.u32 %v366, 4294901760
        %v1067 = vsub.f32 %v366, %v1066
        %v1068 = vand.u32 %v1067, 4294901760
        %1069 = vmatpush1.msra.mxu0 %v1068
        %v1070 = vand.u32 %v370, 4294901760
        %v1071 = vsub.f32 %v370, %v1070
        %v1072 = vand.u32 %v1071, 4294901760
        %1073 = vmatprep.subr.mxu0 %v1072
        %v1074 = vand.u32 %v369, 4294901760
        %v1075 = vsub.f32 %v369, %v1074
        %v1076 = vand.u32 %v1075, 4294901760
        %1077 = vmatpush1.msra.mxu0 %v1076
        %v1078 = vand.u32 %v373, 4294901760
        %v1079 = vsub.f32 %v373, %v1078
        %v1080 = vand.u32 %v1079, 4294901760
        %1081 = vmatprep.subr.mxu0 %v1080
        %v1082 = vand.u32 %v372, 4294901760
        %v1083 = vsub.f32 %v372, %v1082
        %v1084 = vand.u32 %v1083, 4294901760
        %1085 = vmatpush1.msra.mxu0 %v1084
        %1086 = vmatprep.subr.mxu0 0.0
        %1087 = vmatpush1.msra.mxu0 0.0
        %1088 = vmatprep.subr.mxu0 0.0
        %1089 = vmatpush1.msra.mxu0 0.0
        %1090 = vmatprep.subr.mxu0 0.0
        %1091 = vmatpush1.msra.mxu0 0.0
        %1092 = vmatprep.subr.mxu0 0.0
        %1093 = vmatpush1.msra.mxu0 0.0
        %1094 = vmatprep.subr.mxu0 0.0
        %1095 = vmatpush1.msra.mxu0 0.0
        %1096 = vmatprep.subr.mxu0 0.0
        %1097 = vmatpush1.msra.mxu0 0.0
        %1098 = vmatprep.subr.mxu0 0.0
        %1099 = vmatpush1.msra.mxu0 0.0
        %1100 = vmatprep.subr.mxu0 0.0
        %1101 = vmatpush1.msra.mxu0 0.0
        %1102 = vmatprep.subr.mxu0 0.0
        %1103 = vmatpush1.msra.mxu0 0.0
        %1104 = vmatprep.subr.mxu0 0.0
        %1105 = vmatpush1.msra.mxu0 0.0
        %1106 = vmatprep.subr.mxu0 0.0
        %1107 = vmatpush1.msra.mxu0 0.0
        %1108 = vmatprep.subr.mxu0 0.0
        %1109 = vmatpush1.msra.mxu0 0.0
        %1110 = vmatprep.subr.mxu0 0.0
        %1111 = vmatpush1.msra.mxu0 0.0
        %1112 = vmatprep.subr.mxu0 0.0
        %1113 = vmatpush1.msra.mxu0 0.0
        %1114 = vmatprep.subr.mxu0 0.0
        %1115 = vmatpush1.msra.mxu0 0.0
        %1116 = vmatprep.subr.mxu0 0.0
        %1117 = vmatpush1.msra.mxu0 0.0
        %1118 = vmatprep.mubr.f32.mxu0 0.0
        %v1119 = vand.u32 %v325, 4294901760
        %1120 = vmatmul.mubr.f32.gmra.mrb[0].mxu0 %v1119
        %v1121 = vpop.f32.mrb[0].mxu0
        %v1122 = vadd.f32 %v954, %v1121
        %v1123 = vpop.f32.mrb[0].mxu0
        %v1124 = vadd.f32 %v956, %v1123
        %1125 = vdwg.mxu0
        %v1126 = vand.u32 %v328, 4294901760
        %1127 = vmatprep.subr.mxu0 %v1126
        %v1128 = vand.u32 %v327, 4294901760
        %1129 = vmatpush1.msra.mxu0 %v1128
        %v1130 = vand.u32 %v331, 4294901760
        %1131 = vmatprep.subr.mxu0 %v1130
        %v1132 = vand.u32 %v330, 4294901760
        %1133 = vmatpush1.msra.mxu0 %v1132
        %v1134 = vand.u32 %v334, 4294901760
        %1135 = vmatprep.subr.mxu0 %v1134
        %v1136 = vand.u32 %v333, 4294901760
        %1137 = vmatpush1.msra.mxu0 %v1136
        %v1138 = vand.u32 %v337, 4294901760
        %1139 = vmatprep.subr.mxu0 %v1138
        %v1140 = vand.u32 %v336, 4294901760
        %1141 = vmatpush1.msra.mxu0 %v1140
        %v1142 = vand.u32 %v340, 4294901760
        %1143 = vmatprep.subr.mxu0 %v1142
        %v1144 = vand.u32 %v339, 4294901760
        %1145 = vmatpush1.msra.mxu0 %v1144
        %v1146 = vand.u32 %v343, 4294901760
        %1147 = vmatprep.subr.mxu0 %v1146
        %v1148 = vand.u32 %v342, 4294901760
        %1149 = vmatpush1.msra.mxu0 %v1148
        %v1150 = vand.u32 %v346, 4294901760
        %1151 = vmatprep.subr.mxu0 %v1150
        %v1152 = vand.u32 %v345, 4294901760
        %1153 = vmatpush1.msra.mxu0 %v1152
        %v1154 = vand.u32 %v349, 4294901760
        %1155 = vmatprep.subr.mxu0 %v1154
        %v1156 = vand.u32 %v348, 4294901760
        %1157 = vmatpush1.msra.mxu0 %v1156
        %v1158 = vand.u32 %v352, 4294901760
        %1159 = vmatprep.subr.mxu0 %v1158
        %v1160 = vand.u32 %v351, 4294901760
        %1161 = vmatpush1.msra.mxu0 %v1160
        %v1162 = vand.u32 %v355, 4294901760
        %1163 = vmatprep.subr.mxu0 %v1162
        %v1164 = vand.u32 %v354, 4294901760
        %1165 = vmatpush1.msra.mxu0 %v1164
        %v1166 = vand.u32 %v358, 4294901760
        %1167 = vmatprep.subr.mxu0 %v1166
        %v1168 = vand.u32 %v357, 4294901760
        %1169 = vmatpush1.msra.mxu0 %v1168
        %v1170 = vand.u32 %v361, 4294901760
        %1171 = vmatprep.subr.mxu0 %v1170
        %v1172 = vand.u32 %v360, 4294901760
        %1173 = vmatpush1.msra.mxu0 %v1172
        %v1174 = vand.u32 %v364, 4294901760
        %1175 = vmatprep.subr.mxu0 %v1174
        %v1176 = vand.u32 %v363, 4294901760
        %1177 = vmatpush1.msra.mxu0 %v1176
        %v1178 = vand.u32 %v367, 4294901760
        %1179 = vmatprep.subr.mxu0 %v1178
        %v1180 = vand.u32 %v366, 4294901760
        %1181 = vmatpush1.msra.mxu0 %v1180
        %v1182 = vand.u32 %v370, 4294901760
        %1183 = vmatprep.subr.mxu0 %v1182
        %v1184 = vand.u32 %v369, 4294901760
        %1185 = vmatpush1.msra.mxu0 %v1184
        %v1186 = vand.u32 %v373, 4294901760
        %1187 = vmatprep.subr.mxu0 %v1186
        %v1188 = vand.u32 %v372, 4294901760
        %1189 = vmatpush1.msra.mxu0 %v1188
        %1190 = vmatprep.subr.mxu0 0.0
        %1191 = vmatpush1.msra.mxu0 0.0
        %1192 = vmatprep.subr.mxu0 0.0
        %1193 = vmatpush1.msra.mxu0 0.0
        %1194 = vmatprep.subr.mxu0 0.0
        %1195 = vmatpush1.msra.mxu0 0.0
        %1196 = vmatprep.subr.mxu0 0.0
        %1197 = vmatpush1.msra.mxu0 0.0
        %1198 = vmatprep.subr.mxu0 0.0
        %1199 = vmatpush1.msra.mxu0 0.0
        %1200 = vmatprep.subr.mxu0 0.0
        %1201 = vmatpush1.msra.mxu0 0.0
        %1202 = vmatprep.subr.mxu0 0.0
        %1203 = vmatpush1.msra.mxu0 0.0
        %1204 = vmatprep.subr.mxu0 0.0
        %1205 = vmatpush1.msra.mxu0 0.0
        %1206 = vmatprep.subr.mxu0 0.0
        %1207 = vmatpush1.msra.mxu0 0.0
        %1208 = vmatprep.subr.mxu0 0.0
        %1209 = vmatpush1.msra.mxu0 0.0
        %1210 = vmatprep.subr.mxu0 0.0
        %1211 = vmatpush1.msra.mxu0 0.0
        %1212 = vmatprep.subr.mxu0 0.0
        %1213 = vmatpush1.msra.mxu0 0.0
        %1214 = vmatprep.subr.mxu0 0.0
        %1215 = vmatpush1.msra.mxu0 0.0
        %1216 = vmatprep.subr.mxu0 0.0
        %1217 = vmatpush1.msra.mxu0 0.0
        %1218 = vmatprep.subr.mxu0 0.0
        %1219 = vmatpush1.msra.mxu0 0.0
        %1220 = vmatprep.subr.mxu0 0.0
        %1221 = vmatpush1.msra.mxu0 0.0
        %1222 = vmatprep.mubr.f32.mxu0 0.0
        %v1223 = vand.u32 %v325, 4294901760
        %1224 = vmatmul.mubr.f32.gmra.mrb[0].mxu0 %v1223
        %v1225 = vpop.f32.mrb[0].mxu0
        %v1226 = vadd.f32 %v1122, %v1225
        %v1227 = vpop.f32.mrb[0].mxu0
        %v1228 = vadd.f32 %v1124, %v1227
        %1229 = vdwg.mxu0
        %1230 = vmatprep.subr.mxu0 0.0
        %v1231 = vand.u32 %v329, 4294901760
        %1232 = vmatpush1.msra.mxu0 %v1231
        %1233 = vmatprep.subr.mxu0 0.0
        %v1234 = vand.u32 %v332, 4294901760
        %1235 = vmatpush1.msra.mxu0 %v1234
        %1236 = vmatprep.subr.mxu0 0.0
        %v1237 = vand.u32 %v335, 4294901760
        %1238 = vmatpush1.msra.mxu0 %v1237
        %1239 = vmatprep.subr.mxu0 0.0
        %v1240 = vand.u32 %v338, 4294901760
        %1241 = vmatpush1.msra.mxu0 %v1240
        %1242 = vmatprep.subr.mxu0 0.0
        %v1243 = vand.u32 %v341, 4294901760
        %1244 = vmatpush1.msra.mxu0 %v1243
        %1245 = vmatprep.subr.mxu0 0.0
        %v1246 = vand.u32 %v344, 4294901760
        %1247 = vmatpush1.msra.mxu0 %v1246
        %1248 = vmatprep.subr.mxu0 0.0
        %v1249 = vand.u32 %v347, 4294901760
        %1250 = vmatpush1.msra.mxu0 %v1249
        %1251 = vmatprep.subr.mxu0 0.0
        %v1252 = vand.u32 %v350, 4294901760
        %1253 = vmatpush1.msra.mxu0 %v1252
        %1254 = vmatprep.subr.mxu0 0.0
        %v1255 = vand.u32 %v353, 4294901760
        %1256 = vmatpush1.msra.mxu0 %v1255
        %1257 = vmatprep.subr.mxu0 0.0
        %v1258 = vand.u32 %v356, 4294901760
        %1259 = vmatpush1.msra.mxu0 %v1258
        %1260 = vmatprep.subr.mxu0 0.0
        %v1261 = vand.u32 %v359, 4294901760
        %1262 = vmatpush1.msra.mxu0 %v1261
        %1263 = vmatprep.subr.mxu0 0.0
        %v1264 = vand.u32 %v362, 4294901760
        %1265 = vmatpush1.msra.mxu0 %v1264
        %1266 = vmatprep.subr.mxu0 0.0
        %v1267 = vand.u32 %v365, 4294901760
        %1268 = vmatpush1.msra.mxu0 %v1267
        %1269 = vmatprep.subr.mxu0 0.0
        %v1270 = vand.u32 %v368, 4294901760
        %1271 = vmatpush1.msra.mxu0 %v1270
        %1272 = vmatprep.subr.mxu0 0.0
        %v1273 = vand.u32 %v371, 4294901760
        %1274 = vmatpush1.msra.mxu0 %v1273
        %1275 = vmatprep.subr.mxu0 0.0
        %v1276 = vand.u32 %v374, 4294901760
        %1277 = vmatpush1.msra.mxu0 %v1276
        %1278 = vmatprep.subr.mxu0 0.0
        %1279 = vmatpush1.msra.mxu0 0.0
        %1280 = vmatprep.subr.mxu0 0.0
        %1281 = vmatpush1.msra.mxu0 0.0
        %1282 = vmatprep.subr.mxu0 0.0
        %1283 = vmatpush1.msra.mxu0 0.0
        %1284 = vmatprep.subr.mxu0 0.0
        %1285 = vmatpush1.msra.mxu0 0.0
        %1286 = vmatprep.subr.mxu0 0.0
        %1287 = vmatpush1.msra.mxu0 0.0
        %1288 = vmatprep.subr.mxu0 0.0
        %1289 = vmatpush1.msra.mxu0 0.0
        %1290 = vmatprep.subr.mxu0 0.0
        %1291 = vmatpush1.msra.mxu0 0.0
        %1292 = vmatprep.subr.mxu0 0.0
        %1293 = vmatpush1.msra.mxu0 0.0
        %1294 = vmatprep.subr.mxu0 0.0
        %1295 = vmatpush1.msra.mxu0 0.0
        %1296 = vmatprep.subr.mxu0 0.0
        %1297 = vmatpush1.msra.mxu0 0.0
        %1298 = vmatprep.subr.mxu0 0.0
        %1299 = vmatpush1.msra.mxu0 0.0
        %1300 = vmatprep.subr.mxu0 0.0
        %1301 = vmatpush1.msra.mxu0 0.0
        %1302 = vmatprep.subr.mxu0 0.0
        %1303 = vmatpush1.msra.mxu0 0.0
        %1304 = vmatprep.subr.mxu0 0.0
        %1305 = vmatpush1.msra.mxu0 0.0
        %1306 = vmatprep.subr.mxu0 0.0
        %1307 = vmatpush1.msra.mxu0 0.0
        %1308 = vmatprep.subr.mxu0 0.0
        %1309 = vmatpush1.msra.mxu0 0.0
        %1310 = vmatprep.mubr.f32.mxu0 0.0
        %v1311 = vand.u32 %v325, 4294901760
        %v1312 = vsub.f32 %v325, %v1311
        %v1313 = vand.u32 %v1312, 4294901760
        %v1314 = vsub.f32 %v1312, %v1313
        %v1315 = vand.u32 %v1314, 4294901760
        %1316 = vmatmul.mubr.f32.gmra.mrb[0].mxu0 %v1315
        %v1317 = vpop.f32.mrb[0].mxu0
        %v1318 = vadd.f32 0.0, %v1317
        %v1319 = vpop.f32.mrb[0].mxu0
        %1320 = vdwg.mxu0
        %1321 = vmatprep.subr.mxu0 0.0
        %v1322 = vand.u32 %v329, 4294901760
        %v1323 = vsub.f32 %v329, %v1322
        %v1324 = vand.u32 %v1323, 4294901760
        %v1325 = vsub.f32 %v1323, %v1324
        %v1326 = vand.u32 %v1325, 4294901760
        %1327 = vmatpush1.msra.mxu0 %v1326
        %1328 = vmatprep.subr.mxu0 0.0
        %v1329 = vand.u32 %v332, 4294901760
        %v1330 = vsub.f32 %v332, %v1329
        %v1331 = vand.u32 %v1330, 4294901760
        %v1332 = vsub.f32 %v1330, %v1331
        %v1333 = vand.u32 %v1332, 4294901760
        %1334 = vmatpush1.msra.mxu0 %v1333
        %1335 = vmatprep.subr.mxu0 0.0
        %v1336 = vand.u32 %v335, 4294901760
        %v1337 = vsub.f32 %v335, %v1336
        %v1338 = vand.u32 %v1337, 4294901760
        %v1339 = vsub.f32 %v1337, %v1338
        %v1340 = vand.u32 %v1339, 4294901760
        %1341 = vmatpush1.msra.mxu0 %v1340
        %1342 = vmatprep.subr.mxu0 0.0
        %v1343 = vand.u32 %v338, 4294901760
        %v1344 = vsub.f32 %v338, %v1343
        %v1345 = vand.u32 %v1344, 4294901760
        %v1346 = vsub.f32 %v1344, %v1345
        %v1347 = vand.u32 %v1346, 4294901760
        %1348 = vmatpush1.msra.mxu0 %v1347
        %1349 = vmatprep.subr.mxu0 0.0
        %v1350 = vand.u32 %v341, 4294901760
        %v1351 = vsub.f32 %v341, %v1350
        %v1352 = vand.u32 %v1351, 4294901760
        %v1353 = vsub.f32 %v1351, %v1352
        %v1354 = vand.u32 %v1353, 4294901760
        %1355 = vmatpush1.msra.mxu0 %v1354
        %1356 = vmatprep.subr.mxu0 0.0
        %v1357 = vand.u32 %v344, 4294901760
        %v1358 = vsub.f32 %v344, %v1357
        %v1359 = vand.u32 %v1358, 4294901760
        %v1360 = vsub.f32 %v1358, %v1359
        %v1361 = vand.u32 %v1360, 4294901760
        %1362 = vmatpush1.msra.mxu0 %v1361
        %1363 = vmatprep.subr.mxu0 0.0
        %v1364 = vand.u32 %v347, 4294901760
        %v1365 = vsub.f32 %v347, %v1364
        %v1366 = vand.u32 %v1365, 4294901760
        %v1367 = vsub.f32 %v1365, %v1366
        %v1368 = vand.u32 %v1367, 4294901760
        %1369 = vmatpush1.msra.mxu0 %v1368
        %1370 = vmatprep.subr.mxu0 0.0
        %v1371 = vand.u32 %v350, 4294901760
        %v1372 = vsub.f32 %v350, %v1371
        %v1373 = vand.u32 %v1372, 4294901760
        %v1374 = vsub.f32 %v1372, %v1373
        %v1375 = vand.u32 %v1374, 4294901760
        %1376 = vmatpush1.msra.mxu0 %v1375
        %1377 = vmatprep.subr.mxu0 0.0
        %v1378 = vand.u32 %v353, 4294901760
        %v1379 = vsub.f32 %v353, %v1378
        %v1380 = vand.u32 %v1379, 4294901760
        %v1381 = vsub.f32 %v1379, %v1380
        %v1382 = vand.u32 %v1381, 4294901760
        %1383 = vmatpush1.msra.mxu0 %v1382
        %1384 = vmatprep.subr.mxu0 0.0
        %v1385 = vand.u32 %v356, 4294901760
        %v1386 = vsub.f32 %v356, %v1385
        %v1387 = vand.u32 %v1386, 4294901760
        %v1388 = vsub.f32 %v1386, %v1387
        %v1389 = vand.u32 %v1388, 4294901760
        %1390 = vmatpush1.msra.mxu0 %v1389
        %1391 = vmatprep.subr.mxu0 0.0
        %v1392 = vand.u32 %v359, 4294901760
        %v1393 = vsub.f32 %v359, %v1392
        %v1394 = vand.u32 %v1393, 4294901760
        %v1395 = vsub.f32 %v1393, %v1394
        %v1396 = vand.u32 %v1395, 4294901760
        %1397 = vmatpush1.msra.mxu0 %v1396
        %1398 = vmatprep.subr.mxu0 0.0
        %v1399 = vand.u32 %v362, 4294901760
        %v1400 = vsub.f32 %v362, %v1399
        %v1401 = vand.u32 %v1400, 4294901760
        %v1402 = vsub.f32 %v1400, %v1401
        %v1403 = vand.u32 %v1402, 4294901760
        %1404 = vmatpush1.msra.mxu0 %v1403
        %1405 = vmatprep.subr.mxu0 0.0
        %v1406 = vand.u32 %v365, 4294901760
        %v1407 = vsub.f32 %v365, %v1406
        %v1408 = vand.u32 %v1407, 4294901760
        %v1409 = vsub.f32 %v1407, %v1408
        %v1410 = vand.u32 %v1409, 4294901760
        %1411 = vmatpush1.msra.mxu0 %v1410
        %1412 = vmatprep.subr.mxu0 0.0
        %v1413 = vand.u32 %v368, 4294901760
        %v1414 = vsub.f32 %v368, %v1413
        %v1415 = vand.u32 %v1414, 4294901760
        %v1416 = vsub.f32 %v1414, %v1415
        %v1417 = vand.u32 %v1416, 4294901760
        %1418 = vmatpush1.msra.mxu0 %v1417
        %1419 = vmatprep.subr.mxu0 0.0
        %v1420 = vand.u32 %v371, 4294901760
        %v1421 = vsub.f32 %v371, %v1420
        %v1422 = vand.u32 %v1421, 4294901760
        %v1423 = vsub.f32 %v1421, %v1422
        %v1424 = vand.u32 %v1423, 4294901760
        %1425 = vmatpush1.msra.mxu0 %v1424
        %1426 = vmatprep.subr.mxu0 0.0
        %v1427 = vand.u32 %v374, 4294901760
        %v1428 = vsub.f32 %v374, %v1427
        %v1429 = vand.u32 %v1428, 4294901760
        %v1430 = vsub.f32 %v1428, %v1429
        %v1431 = vand.u32 %v1430, 4294901760
        %1432 = vmatpush1.msra.mxu0 %v1431
        %1433 = vmatprep.subr.mxu0 0.0
        %1434 = vmatpush1.msra.mxu0 0.0
        %1435 = vmatprep.subr.mxu0 0.0
        %1436 = vmatpush1.msra.mxu0 0.0
        %1437 = vmatprep.subr.mxu0 0.0
        %1438 = vmatpush1.msra.mxu0 0.0
        %1439 = vmatprep.subr.mxu0 0.0
        %1440 = vmatpush1.msra.mxu0 0.0
        %1441 = vmatprep.subr.mxu0 0.0
        %1442 = vmatpush1.msra.mxu0 0.0
        %1443 = vmatprep.subr.mxu0 0.0
        %1444 = vmatpush1.msra.mxu0 0.0
        %1445 = vmatprep.subr.mxu0 0.0
        %1446 = vmatpush1.msra.mxu0 0.0
        %1447 = vmatprep.subr.mxu0 0.0
        %1448 = vmatpush1.msra.mxu0 0.0
        %1449 = vmatprep.subr.mxu0 0.0
        %1450 = vmatpush1.msra.mxu0 0.0
        %1451 = vmatprep.subr.mxu0 0.0
        %1452 = vmatpush1.msra.mxu0 0.0
        %1453 = vmatprep.subr.mxu0 0.0
        %1454 = vmatpush1.msra.mxu0 0.0
        %1455 = vmatprep.subr.mxu0 0.0
        %1456 = vmatpush1.msra.mxu0 0.0
        %1457 = vmatprep.subr.mxu0 0.0
        %1458 = vmatpush1.msra.mxu0 0.0
        %1459 = vmatprep.subr.mxu0 0.0
        %1460 = vmatpush1.msra.mxu0 0.0
        %1461 = vmatprep.subr.mxu0 0.0
        %1462 = vmatpush1.msra.mxu0 0.0
        %1463 = vmatprep.subr.mxu0 0.0
        %1464 = vmatpush1.msra.mxu0 0.0
        %1465 = vmatprep.mubr.f32.mxu0 0.0
        %v1466 = vand.u32 %v325, 4294901760
        %1467 = vmatmul.mubr.f32.gmra.mrb[0].mxu0 %v1466
        %v1468 = vpop.f32.mrb[0].mxu0
        %v1469 = vadd.f32 %v1318, %v1468
        %v1470 = vpop.f32.mrb[0].mxu0
        %1471 = vdwg.mxu0
        %1472 = vmatprep.subr.mxu0 0.0
        %v1473 = vand.u32 %v329, 4294901760
        %v1474 = vsub.f32 %v329, %v1473
        %1475 = vmatpush1.msra.mxu0 %v1474
        %1476 = vmatprep.subr.mxu0 0.0
        %v1477 = vand.u32 %v332, 4294901760
        %v1478 = vsub.f32 %v332, %v1477
        %1479 = vmatpush1.msra.mxu0 %v1478
        %1480 = vmatprep.subr.mxu0 0.0
        %v1481 = vand.u32 %v335, 4294901760
        %v1482 = vsub.f32 %v335, %v1481
        %1483 = vmatpush1.msra.mxu0 %v1482
        %1484 = vmatprep.subr.mxu0 0.0
        %v1485 = vand.u32 %v338, 4294901760
        %v1486 = vsub.f32 %v338, %v1485
        %1487 = vmatpush1.msra.mxu0 %v1486
        %1488 = vmatprep.subr.mxu0 0.0
        %v1489 = vand.u32 %v341, 4294901760
        %v1490 = vsub.f32 %v341, %v1489
        %1491 = vmatpush1.msra.mxu0 %v1490
        %1492 = vmatprep.subr.mxu0 0.0
        %v1493 = vand.u32 %v344, 4294901760
        %v1494 = vsub.f32 %v344, %v1493
        %1495 = vmatpush1.msra.mxu0 %v1494
        %1496 = vmatprep.subr.mxu0 0.0
        %v1497 = vand.u32 %v347, 4294901760
        %v1498 = vsub.f32 %v347, %v1497
        %1499 = vmatpush1.msra.mxu0 %v1498
        %1500 = vmatprep.subr.mxu0 0.0
        %v1501 = vand.u32 %v350, 4294901760
        %v1502 = vsub.f32 %v350, %v1501
        %1503 = vmatpush1.msra.mxu0 %v1502
        %1504 = vmatprep.subr.mxu0 0.0
        %v1505 = vand.u32 %v353, 4294901760
        %v1506 = vsub.f32 %v353, %v1505
        %1507 = vmatpush1.msra.mxu0 %v1506
        %1508 = vmatprep.subr.mxu0 0.0
        %v1509 = vand.u32 %v356, 4294901760
        %v1510 = vsub.f32 %v356, %v1509
        %1511 = vmatpush1.msra.mxu0 %v1510
        %1512 = vmatprep.subr.mxu0 0.0
        %v1513 = vand.u32 %v359, 4294901760
        %v1514 = vsub.f32 %v359, %v1513
        %1515 = vmatpush1.msra.mxu0 %v1514
        %1516 = vmatprep.subr.mxu0 0.0
        %v1517 = vand.u32 %v362, 4294901760
        %v1518 = vsub.f32 %v362, %v1517
        %1519 = vmatpush1.msra.mxu0 %v1518
        %1520 = vmatprep.subr.mxu0 0.0
        %v1521 = vand.u32 %v365, 4294901760
        %v1522 = vsub.f32 %v365, %v1521
        %1523 = vmatpush1.msra.mxu0 %v1522
        %1524 = vmatprep.subr.mxu0 0.0
        %v1525 = vand.u32 %v368, 4294901760
        %v1526 = vsub.f32 %v368, %v1525
        %1527 = vmatpush1.msra.mxu0 %v1526
        %1528 = vmatprep.subr.mxu0 0.0
        %v1529 = vand.u32 %v371, 4294901760
        %v1530 = vsub.f32 %v371, %v1529
        %1531 = vmatpush1.msra.mxu0 %v1530
        %1532 = vmatprep.subr.mxu0 0.0
        %v1533 = vand.u32 %v374, 4294901760
        %v1534 = vsub.f32 %v374, %v1533
        %1535 = vmatpush1.msra.mxu0 %v1534
        %1536 = vmatprep.subr.mxu0 0.0
        %1537 = vmatpush1.msra.mxu0 0.0
        %1538 = vmatprep.subr.mxu0 0.0
        %1539 = vmatpush1.msra.mxu0 0.0
        %1540 = vmatprep.subr.mxu0 0.0
        %1541 = vmatpush1.msra.mxu0 0.0
        %1542 = vmatprep.subr.mxu0 0.0
        %1543 = vmatpush1.msra.mxu0 0.0
        %1544 = vmatprep.subr.mxu0 0.0
        %1545 = vmatpush1.msra.mxu0 0.0
        %1546 = vmatprep.subr.mxu0 0.0
        %1547 = vmatpush1.msra.mxu0 0.0
        %1548 = vmatprep.subr.mxu0 0.0
        %1549 = vmatpush1.msra.mxu0 0.0
        %1550 = vmatprep.subr.mxu0 0.0
        %1551 = vmatpush1.msra.mxu0 0.0
        %1552 = vmatprep.subr.mxu0 0.0
        %1553 = vmatpush1.msra.mxu0 0.0
        %1554 = vmatprep.subr.mxu0 0.0
        %1555 = vmatpush1.msra.mxu0 0.0
        %1556 = vmatprep.subr.mxu0 0.0
        %1557 = vmatpush1.msra.mxu0 0.0
        %1558 = vmatprep.subr.mxu0 0.0
        %1559 = vmatpush1.msra.mxu0 0.0
        %1560 = vmatprep.subr.mxu0 0.0
        %1561 = vmatpush1.msra.mxu0 0.0
        %1562 = vmatprep.subr.mxu0 0.0
        %1563 = vmatpush1.msra.mxu0 0.0
        %1564 = vmatprep.subr.mxu0 0.0
        %1565 = vmatpush1.msra.mxu0 0.0
        %1566 = vmatprep.subr.mxu0 0.0
        %1567 = vmatpush1.msra.mxu0 0.0
        %1568 = vmatprep.mubr.f32.mxu0 0.0
        %v1569 = vand.u32 %v325, 4294901760
        %v1570 = vsub.f32 %v325, %v1569
        %1571 = vmatmul.mubr.f32.gmra.mrb[0].mxu0 %v1570
        %v1572 = vpop.f32.mrb[0].mxu0
        %v1573 = vadd.f32 %v1469, %v1572
        %v1574 = vpop.f32.mrb[0].mxu0
        %1575 = vdwg.mxu0
        %1576 = vmatprep.subr.mxu0 0.0
        %v1577 = vand.u32 %v329, 4294901760
        %1578 = vmatpush1.msra.mxu0 %v1577
        %1579 = vmatprep.subr.mxu0 0.0
        %v1580 = vand.u32 %v332, 4294901760
        %1581 = vmatpush1.msra.mxu0 %v1580
        %1582 = vmatprep.subr.mxu0 0.0
        %v1583 = vand.u32 %v335, 4294901760
        %1584 = vmatpush1.msra.mxu0 %v1583
        %1585 = vmatprep.subr.mxu0 0.0
        %v1586 = vand.u32 %v338, 4294901760
        %1587 = vmatpush1.msra.mxu0 %v1586
        %1588 = vmatprep.subr.mxu0 0.0
        %v1589 = vand.u32 %v341, 4294901760
        %1590 = vmatpush1.msra.mxu0 %v1589
        %1591 = vmatprep.subr.mxu0 0.0
        %v1592 = vand.u32 %v344, 4294901760
        %1593 = vmatpush1.msra.mxu0 %v1592
        %1594 = vmatprep.subr.mxu0 0.0
        %v1595 = vand.u32 %v347, 4294901760
        %1596 = vmatpush1.msra.mxu0 %v1595
        %1597 = vmatprep.subr.mxu0 0.0
        %v1598 = vand.u32 %v350, 4294901760
        %1599 = vmatpush1.msra.mxu0 %v1598
        %1600 = vmatprep.subr.mxu0 0.0
        %v1601 = vand.u32 %v353, 4294901760
        %1602 = vmatpush1.msra.mxu0 %v1601
        %1603 = vmatprep.subr.mxu0 0.0
        %v1604 = vand.u32 %v356, 4294901760
        %1605 = vmatpush1.msra.mxu0 %v1604
        %1606 = vmatprep.subr.mxu0 0.0
        %v1607 = vand.u32 %v359, 4294901760
        %1608 = vmatpush1.msra.mxu0 %v1607
        %1609 = vmatprep.subr.mxu0 0.0
        %v1610 = vand.u32 %v362, 4294901760
        %1611 = vmatpush1.msra.mxu0 %v1610
        %1612 = vmatprep.subr.mxu0 0.0
        %v1613 = vand.u32 %v365, 4294901760
        %1614 = vmatpush1.msra.mxu0 %v1613
        %1615 = vmatprep.subr.mxu0 0.0
        %v1616 = vand.u32 %v368, 4294901760
        %1617 = vmatpush1.msra.mxu0 %v1616
        %1618 = vmatprep.subr.mxu0 0.0
        %v1619 = vand.u32 %v371, 4294901760
        %1620 = vmatpush1.msra.mxu0 %v1619
        %1621 = vmatprep.subr.mxu0 0.0
        %v1622 = vand.u32 %v374, 4294901760
        %1623 = vmatpush1.msra.mxu0 %v1622
        %1624 = vmatprep.subr.mxu0 0.0
        %1625 = vmatpush1.msra.mxu0 0.0
        %1626 = vmatprep.subr.mxu0 0.0
        %1627 = vmatpush1.msra.mxu0 0.0
        %1628 = vmatprep.subr.mxu0 0.0
        %1629 = vmatpush1.msra.mxu0 0.0
        %1630 = vmatprep.subr.mxu0 0.0
        %1631 = vmatpush1.msra.mxu0 0.0
        %1632 = vmatprep.subr.mxu0 0.0
        %1633 = vmatpush1.msra.mxu0 0.0
        %1634 = vmatprep.subr.mxu0 0.0
        %1635 = vmatpush1.msra.mxu0 0.0
        %1636 = vmatprep.subr.mxu0 0.0
        %1637 = vmatpush1.msra.mxu0 0.0
        %1638 = vmatprep.subr.mxu0 0.0
        %1639 = vmatpush1.msra.mxu0 0.0
        %1640 = vmatprep.subr.mxu0 0.0
        %1641 = vmatpush1.msra.mxu0 0.0
        %1642 = vmatprep.subr.mxu0 0.0
        %1643 = vmatpush1.msra.mxu0 0.0
        %1644 = vmatprep.subr.mxu0 0.0
        %1645 = vmatpush1.msra.mxu0 0.0
        %1646 = vmatprep.subr.mxu0 0.0
        %1647 = vmatpush1.msra.mxu0 0.0
        %1648 = vmatprep.subr.mxu0 0.0
        %1649 = vmatpush1.msra.mxu0 0.0
        %1650 = vmatprep.subr.mxu0 0.0
        %1651 = vmatpush1.msra.mxu0 0.0
        %1652 = vmatprep.subr.mxu0 0.0
        %1653 = vmatpush1.msra.mxu0 0.0
        %1654 = vmatprep.subr.mxu0 0.0
        %1655 = vmatpush1.msra.mxu0 0.0
        %1656 = vmatprep.mubr.f32.mxu0 0.0
        %v1657 = vand.u32 %v325, 4294901760
        %v1658 = vsub.f32 %v325, %v1657
        %v1659 = vand.u32 %v1658, 4294901760
        %1660 = vmatmul.mubr.f32.gmra.mrb[0].mxu0 %v1659
        %v1661 = vpop.f32.mrb[0].mxu0
        %v1662 = vadd.f32 %v1573, %v1661
        %v1663 = vpop.f32.mrb[0].mxu0
        %1664 = vdwg.mxu0
        %1665 = vmatprep.subr.mxu0 0.0
        %v1666 = vand.u32 %v329, 4294901760
        %v1667 = vsub.f32 %v329, %v1666
        %v1668 = vand.u32 %v1667, 4294901760
        %1669 = vmatpush1.msra.mxu0 %v1668
        %1670 = vmatprep.subr.mxu0 0.0
        %v1671 = vand.u32 %v332, 4294901760
        %v1672 = vsub.f32 %v332, %v1671
        %v1673 = vand.u32 %v1672, 4294901760
        %1674 = vmatpush1.msra.mxu0 %v1673
        %1675 = vmatprep.subr.mxu0 0.0
        %v1676 = vand.u32 %v335, 4294901760
        %v1677 = vsub.f32 %v335, %v1676
        %v1678 = vand.u32 %v1677, 4294901760
        %1679 = vmatpush1.msra.mxu0 %v1678
        %1680 = vmatprep.subr.mxu0 0.0
        %v1681 = vand.u32 %v338, 4294901760
        %v1682 = vsub.f32 %v338, %v1681
        %v1683 = vand.u32 %v1682, 4294901760
        %1684 = vmatpush1.msra.mxu0 %v1683
        %1685 = vmatprep.subr.mxu0 0.0
        %v1686 = vand.u32 %v341, 4294901760
        %v1687 = vsub.f32 %v341, %v1686
        %v1688 = vand.u32 %v1687, 4294901760
        %1689 = vmatpush1.msra.mxu0 %v1688
        %1690 = vmatprep.subr.mxu0 0.0
        %v1691 = vand.u32 %v344, 4294901760
        %v1692 = vsub.f32 %v344, %v1691
        %v1693 = vand.u32 %v1692, 4294901760
        %1694 = vmatpush1.msra.mxu0 %v1693
        %1695 = vmatprep.subr.mxu0 0.0
        %v1696 = vand.u32 %v347, 4294901760
        %v1697 = vsub.f32 %v347, %v1696
        %v1698 = vand.u32 %v1697, 4294901760
        %1699 = vmatpush1.msra.mxu0 %v1698
        %1700 = vmatprep.subr.mxu0 0.0
        %v1701 = vand.u32 %v350, 4294901760
        %v1702 = vsub.f32 %v350, %v1701
        %v1703 = vand.u32 %v1702, 4294901760
        %1704 = vmatpush1.msra.mxu0 %v1703
        %1705 = vmatprep.subr.mxu0 0.0
        %v1706 = vand.u32 %v353, 4294901760
        %v1707 = vsub.f32 %v353, %v1706
        %v1708 = vand.u32 %v1707, 4294901760
        %1709 = vmatpush1.msra.mxu0 %v1708
        %1710 = vmatprep.subr.mxu0 0.0
        %v1711 = vand.u32 %v356, 4294901760
        %v1712 = vsub.f32 %v356, %v1711
        %v1713 = vand.u32 %v1712, 4294901760
        %1714 = vmatpush1.msra.mxu0 %v1713
        %1715 = vmatprep.subr.mxu0 0.0
        %v1716 = vand.u32 %v359, 4294901760
        %v1717 = vsub.f32 %v359, %v1716
        %v1718 = vand.u32 %v1717, 4294901760
        %1719 = vmatpush1.msra.mxu0 %v1718
        %1720 = vmatprep.subr.mxu0 0.0
        %v1721 = vand.u32 %v362, 4294901760
        %v1722 = vsub.f32 %v362, %v1721
        %v1723 = vand.u32 %v1722, 4294901760
        %1724 = vmatpush1.msra.mxu0 %v1723
        %1725 = vmatprep.subr.mxu0 0.0
        %v1726 = vand.u32 %v365, 4294901760
        %v1727 = vsub.f32 %v365, %v1726
        %v1728 = vand.u32 %v1727, 4294901760
        %1729 = vmatpush1.msra.mxu0 %v1728
        %1730 = vmatprep.subr.mxu0 0.0
        %v1731 = vand.u32 %v368, 4294901760
        %v1732 = vsub.f32 %v368, %v1731
        %v1733 = vand.u32 %v1732, 4294901760
        %1734 = vmatpush1.msra.mxu0 %v1733
        %1735 = vmatprep.subr.mxu0 0.0
        %v1736 = vand.u32 %v371, 4294901760
        %v1737 = vsub.f32 %v371, %v1736
        %v1738 = vand.u32 %v1737, 4294901760
        %1739 = vmatpush1.msra.mxu0 %v1738
        %1740 = vmatprep.subr.mxu0 0.0
        %v1741 = vand.u32 %v374, 4294901760
        %v1742 = vsub.f32 %v374, %v1741
        %v1743 = vand.u32 %v1742, 4294901760
        %1744 = vmatpush1.msra.mxu0 %v1743
        %1745 = vmatprep.subr.mxu0 0.0
        %1746 = vmatpush1.msra.mxu0 0.0
        %1747 = vmatprep.subr.mxu0 0.0
        %1748 = vmatpush1.msra.mxu0 0.0
        %1749 = vmatprep.subr.mxu0 0.0
        %1750 = vmatpush1.msra.mxu0 0.0
        %1751 = vmatprep.subr.mxu0 0.0
        %1752 = vmatpush1.msra.mxu0 0.0
        %1753 = vmatprep.subr.mxu0 0.0
        %1754 = vmatpush1.msra.mxu0 0.0
        %1755 = vmatprep.subr.mxu0 0.0
        %1756 = vmatpush1.msra.mxu0 0.0
        %1757 = vmatprep.subr.mxu0 0.0
        %1758 = vmatpush1.msra.mxu0 0.0
        %1759 = vmatprep.subr.mxu0 0.0
        %1760 = vmatpush1.msra.mxu0 0.0
        %1761 = vmatprep.subr.mxu0 0.0
        %1762 = vmatpush1.msra.mxu0 0.0
        %1763 = vmatprep.subr.mxu0 0.0
        %1764 = vmatpush1.msra.mxu0 0.0
        %1765 = vmatprep.subr.mxu0 0.0
        %1766 = vmatpush1.msra.mxu0 0.0
        %1767 = vmatprep.subr.mxu0 0.0
        %1768 = vmatpush1.msra.mxu0 0.0
        %1769 = vmatprep.subr.mxu0 0.0
        %1770 = vmatpush1.msra.mxu0 0.0
        %1771 = vmatprep.subr.mxu0 0.0
        %1772 = vmatpush1.msra.mxu0 0.0
        %1773 = vmatprep.subr.mxu0 0.0
        %1774 = vmatpush1.msra.mxu0 0.0
        %1775 = vmatprep.subr.mxu0 0.0
        %1776 = vmatpush1.msra.mxu0 0.0
        %1777 = vmatprep.mubr.f32.mxu0 0.0
        %v1778 = vand.u32 %v325, 4294901760
        %1779 = vmatmul.mubr.f32.gmra.mrb[0].mxu0 %v1778
        %v1780 = vpop.f32.mrb[0].mxu0
        %v1781 = vadd.f32 %v1662, %v1780
        %v1782 = vpop.f32.mrb[0].mxu0
        %1783 = vdwg.mxu0
        %1784 = vmatprep.subr.mxu0 0.0
        %v1785 = vand.u32 %v329, 4294901760
        %1786 = vmatpush1.msra.mxu0 %v1785
        %1787 = vmatprep.subr.mxu0 0.0
        %v1788 = vand.u32 %v332, 4294901760
        %1789 = vmatpush1.msra.mxu0 %v1788
        %1790 = vmatprep.subr.mxu0 0.0
        %v1791 = vand.u32 %v335, 4294901760
        %1792 = vmatpush1.msra.mxu0 %v1791
        %1793 = vmatprep.subr.mxu0 0.0
        %v1794 = vand.u32 %v338, 4294901760
        %1795 = vmatpush1.msra.mxu0 %v1794
        %1796 = vmatprep.subr.mxu0 0.0
        %v1797 = vand.u32 %v341, 4294901760
        %1798 = vmatpush1.msra.mxu0 %v1797
        %1799 = vmatprep.subr.mxu0 0.0
        %v1800 = vand.u32 %v344, 4294901760
        %1801 = vmatpush1.msra.mxu0 %v1800
        %1802 = vmatprep.subr.mxu0 0.0
        %v1803 = vand.u32 %v347, 4294901760
        %1804 = vmatpush1.msra.mxu0 %v1803
        %1805 = vmatprep.subr.mxu0 0.0
        %v1806 = vand.u32 %v350, 4294901760
        %1807 = vmatpush1.msra.mxu0 %v1806
        %1808 = vmatprep.subr.mxu0 0.0
        %v1809 = vand.u32 %v353, 4294901760
        %1810 = vmatpush1.msra.mxu0 %v1809
        %1811 = vmatprep.subr.mxu0 0.0
        %v1812 = vand.u32 %v356, 4294901760
        %1813 = vmatpush1.msra.mxu0 %v1812
        %1814 = vmatprep.subr.mxu0 0.0
        %v1815 = vand.u32 %v359, 4294901760
        %1816 = vmatpush1.msra.mxu0 %v1815
        %1817 = vmatprep.subr.mxu0 0.0
        %v1818 = vand.u32 %v362, 4294901760
        %1819 = vmatpush1.msra.mxu0 %v1818
        %1820 = vmatprep.subr.mxu0 0.0
        %v1821 = vand.u32 %v365, 4294901760
        %1822 = vmatpush1.msra.mxu0 %v1821
        %1823 = vmatprep.subr.mxu0 0.0
        %v1824 = vand.u32 %v368, 4294901760
        %1825 = vmatpush1.msra.mxu0 %v1824
        %1826 = vmatprep.subr.mxu0 0.0
        %v1827 = vand.u32 %v371, 4294901760
        %1828 = vmatpush1.msra.mxu0 %v1827
        %1829 = vmatprep.subr.mxu0 0.0
        %v1830 = vand.u32 %v374, 4294901760
        %1831 = vmatpush1.msra.mxu0 %v1830
        %1832 = vmatprep.subr.mxu0 0.0
        %1833 = vmatpush1.msra.mxu0 0.0
        %1834 = vmatprep.subr.mxu0 0.0
        %1835 = vmatpush1.msra.mxu0 0.0
        %1836 = vmatprep.subr.mxu0 0.0
        %1837 = vmatpush1.msra.mxu0 0.0
        %1838 = vmatprep.subr.mxu0 0.0
        %1839 = vmatpush1.msra.mxu0 0.0
        %1840 = vmatprep.subr.mxu0 0.0
        %1841 = vmatpush1.msra.mxu0 0.0
        %1842 = vmatprep.subr.mxu0 0.0
        %1843 = vmatpush1.msra.mxu0 0.0
        %1844 = vmatprep.subr.mxu0 0.0
        %1845 = vmatpush1.msra.mxu0 0.0
        %1846 = vmatprep.subr.mxu0 0.0
        %1847 = vmatpush1.msra.mxu0 0.0
        %1848 = vmatprep.subr.mxu0 0.0
        %1849 = vmatpush1.msra.mxu0 0.0
        %1850 = vmatprep.subr.mxu0 0.0
        %1851 = vmatpush1.msra.mxu0 0.0
        %1852 = vmatprep.subr.mxu0 0.0
        %1853 = vmatpush1.msra.mxu0 0.0
        %1854 = vmatprep.subr.mxu0 0.0
        %1855 = vmatpush1.msra.mxu0 0.0
        %1856 = vmatprep.subr.mxu0 0.0
        %1857 = vmatpush1.msra.mxu0 0.0
        %1858 = vmatprep.subr.mxu0 0.0
        %1859 = vmatpush1.msra.mxu0 0.0
        %1860 = vmatprep.subr.mxu0 0.0
        %1861 = vmatpush1.msra.mxu0 0.0
        %1862 = vmatprep.subr.mxu0 0.0
        %1863 = vmatpush1.msra.mxu0 0.0
        %1864 = vmatprep.mubr.f32.mxu0 0.0
        %v1865 = vand.u32 %v325, 4294901760
        %1866 = vmatmul.mubr.f32.gmra.mrb[0].mxu0 %v1865
        %v1867 = vpop.f32.mrb[0].mxu0
        %v1868 = vadd.f32 %v1781, %v1867
        %v1869 = vpop.f32.mrb[0].mxu0
        %1870 = vdwg.mxu0
        %v1872 = vrot.slane %v326, 3
        %v1877 = vcombine.low %v1226, %v1228
        %v1879 = vunpack.c.l.s4 1966171168
        %v1880 = vunpack.c.0.s8 %v1879
        %v1881 = vlaneseq
        %v1882 = vshrl.u32 %v1881, 7
        %v1883 = vsub.s32 %v1880, %v1882
        %v1884 = vrot.slane %v1877, %v1883
        %v1886 = vunpack.c.l.s4 1966171168
        %v1887 = vunpack.c.0.s8 %v1886
        %v1888 = vlaneseq
        %v1889 = vshrl.u32 %v1888, 7
        %v1890 = vsub.s32 %v1887, %v1889
        %v1891 = vrot.slane %v1868, %v1890
        %v1892 = vcombine.low %v1884, %v1891
        %v1894 = vunpack.c.l.s4 1966171168
        %v1895 = vunpack.c.0.s8 %v1894
        %v1896 = vlaneseq
        %v1897 = vshrl.u32 %v1896, 7
        %v1898 = vsub.s32 %v1895, %v1897
        %v1899 = vrot.slane %v1892, %v1898
        %v1901 = vadd.f32 %v1872, %v1899
        %v1902 = vadd.f32 %v326, %v1901
        %v1903 = vxor.u32 %v1902, 2147483648
        %v1904 = vmul.f32 %v1903, 1.442695
        %v1905 = vpow.pop %v1904
        %v1906 = vadd.f32 %v1905, 1.0
        %v1907 = vrcp.pop %v1906
        %v1908 = vmul.f32 1.0, %v1907
        %v1909 = vrot.slane %v326, 1
        %v1912 = vrot.slane %v1901, 1
        %v1914 = vadd.f32 %v1909, %v1912
        %v1915 = vxor.u32 %v1914, 2147483648
        %v1916 = vmul.f32 %v1915, 1.442695
        %v1917 = vpow.pop %v1916
        %v1918 = vadd.f32 %v1917, 1.0
        %v1919 = vrcp.pop %v1918
        %v1920 = vmul.f32 1.0, %v1919
        %v1921 = vrot.slane %v1901, 2
        %v1923 = vmul.f32 %v1908, %v1921
        %v1924 = vrot.slane %v326, 2
        %v1926 = vadd.f32 %v1924, %v1923
        %v1927 = vtanh.pop %v1926
        %v1928 = vsub.f32 %v325, %v1927
        %v1929 = vmul.f32 %v1920, %v1928
        %v1930 = vadd.f32 %v1927, %v1929
        %1931 = vst [vmem:[#allocation2] sm:$0x1] %v1930
        %1932 = vst [vmem:[%s300] sm:$0x1] %v1930
        %1933 = vst [vmem:[%s306] sm:$0x1] %v1908
        %1934 = vst [vmem:[%s312] sm:$0x1] %v1920
        %1935 = vst [vmem:[%s318] sm:$0x1] %v1927
        %s1936 = sand.u32 %s107, 1
        %s1937 = scalar_lea.sflag [#allocation5], %s1936
        %s1938 = sand.u32 %s107, 1
        %s1939 = scalar_lea.vmem [#allocation9], %s1938
        %s1940 = sand.u32 %s31, 1
        %s1941 = scalar_lea.sflag [#allocation11], %s1940
        %s1942 = sand.u32 %s133, 1
        %s1943 = scalar_lea.vmem [#allocation10], %s1942
        %s1944 = sand.u32 %s31, 1
        %s1945 = scalar_lea.sflag [#allocation11], %s1944
        %s1946 = sand.u32 %s159, 1
        %s1947 = scalar_lea.vmem [#allocation12], %s1946
        %s1948 = sand.u32 %s185, 1
        %s1949 = scalar_lea.sflag [#allocation14], %s1948
        %s1950 = sand.u32 %s185, 1
        %s1951 = scalar_lea.vmem [#allocation13], %s1950
        // Predicated region
        $region49: #{tpu_custom_call.1} parent=31 // pred_check
          %p1952 = pneg %p117
        $region50: #{tpu_custom_call.1} parent=31 // pred_check_branch
          %1954 = sbr.rel (%p1952) target = $region52
        $region51: #{tpu_custom_call.1} parent=31 // pred_region
          %s1956 = ssub.s32 16, 16
          %1957 = vsyncadd %s1937, %s1956
          %s1958 = smul.addr %s31, 16
          %s1959 = scalar_lea.hbm %s3, %s1958
          %s1961 = sshll.u32 %s1939, 4
          %s1962 = int_to_ptr.vmem [resolvable:$true] %s1961
          %1964 = dma.vmem_to_hbm [thread:$0]  %s1962, 16, %s1959, %s1937
        $region52: #{tpu_custom_call.1} parent=31 // pred_fallthru
          _
        // Predicated region
        $region53: #{tpu_custom_call.1} parent=31 // pred_check
          %p1965 = pneg %p143
        $region54: #{tpu_custom_call.1} parent=31 // pred_check_branch
          %1967 = sbr.rel (%p1965) target = $region56
        $region55: #{tpu_custom_call.1} parent=31 // pred_region
          %s1969 = ssub.s32 16, 16
          %1970 = vsyncadd %s1941, %s1969
          %s1971 = smul.addr %s31, 16
          %s1972 = scalar_lea.hbm %s4, %s1971
          %s1974 = sshll.u32 %s1943, 4
          %s1975 = int_to_ptr.vmem [resolvable:$true] %s1974
          %1977 = dma.vmem_to_hbm [thread:$0]  %s1975, 16, %s1972, %s1941
        $region56: #{tpu_custom_call.1} parent=31 // pred_fallthru
          _
        // Predicated region
        $region57: #{tpu_custom_call.1} parent=31 // pred_check
          %p1978 = pneg %p169
        $region58: #{tpu_custom_call.1} parent=31 // pred_check_branch
          %1980 = sbr.rel (%p1978) target = $region60
        $region59: #{tpu_custom_call.1} parent=31 // pred_region
          %s1982 = ssub.s32 16, 16
          %1983 = vsyncadd %s1945, %s1982
          %s1984 = smul.addr %s31, 16
          %s1985 = scalar_lea.hbm %s5, %s1984
          %s1987 = sshll.u32 %s1947, 4
          %s1988 = int_to_ptr.vmem [resolvable:$true] %s1987
          %1990 = dma.vmem_to_hbm [thread:$0]  %s1988, 16, %s1985, %s1945
        $region60: #{tpu_custom_call.1} parent=31 // pred_fallthru
          _
        // Predicated region
        $region61: #{tpu_custom_call.1} parent=31 // pred_check
          %p1991 = pneg %p195
        $region62: #{tpu_custom_call.1} parent=31 // pred_check_branch
          %1993 = sbr.rel (%p1991) target = $region64
        $region63: #{tpu_custom_call.1} parent=31 // pred_region
          %s1995 = ssub.s32 16, 16
          %1996 = vsyncadd %s1949, %s1995
          %s1997 = smul.addr %s31, 16
          %s1998 = scalar_lea.hbm %s6, %s1997
          %s2000 = sshll.u32 %s1951, 4
          %s2001 = int_to_ptr.vmem [resolvable:$true] %s2000
          %2003 = dma.vmem_to_hbm [thread:$0]  %s2001, 16, %s1998, %s1949
        $region64: #{tpu_custom_call.1} parent=31 // pred_fallthru
          _
      $region32: #{tpu_custom_call.1} parent=5 // pred_fallthru
        _
      %p2004 = scmp.le.s32.totalorder 2, %s26
      // Predicated region
      $region65: #{tpu_custom_call.1} parent=5 // pred_check
        %p2005 = pneg %p2004
      $region66: #{tpu_custom_call.1} parent=5 // pred_check_branch
        %2007 = sbr.rel (%p2005) target = $region68
      $region67: #{tpu_custom_call.1} parent=5 // pred_region
        %s2008 = ssub.s32 %s26, 2
        // Predicated region
        $region69: #{tpu_custom_call.1} parent=67 // pred_check
          %p2009 = pneg %p123
        $region70: #{tpu_custom_call.1} parent=67 // pred_check_branch
          %2011 = sbr.rel (%p2009) target = $region72
        $region71: #{tpu_custom_call.1} parent=67 // pred_region
          %s2012 = sand.u32 %s108, 1
          %s2013 = scalar_lea.sflag [#allocation5], %s2012
          %s2014 = sand.u32 %s108, 1
          %s2015 = scalar_lea.vmem [#allocation9], %s2014
          %2016 = dma.done %s2013, 16
        $region72: #{tpu_custom_call.1} parent=67 // pred_fallthru
          _
        // Predicated region
        $region73: #{tpu_custom_call.1} parent=67 // pred_check
          %p2017 = pneg %p149
        $region74: #{tpu_custom_call.1} parent=67 // pred_check_branch
          %2019 = sbr.rel (%p2017) target = $region76
        $region75: #{tpu_custom_call.1} parent=67 // pred_region
          %s2020 = sand.u32 %s32, 1
          %s2021 = scalar_lea.sflag [#allocation11], %s2020
          %s2022 = sand.u32 %s134, 1
          %s2023 = scalar_lea.vmem [#allocation10], %s2022
          %2024 = dma.done %s2021, 16
        $region76: #{tpu_custom_call.1} parent=67 // pred_fallthru
          _
        // Predicated region
        $region77: #{tpu_custom_call.1} parent=67 // pred_check
          %p2025 = pneg %p175
        $region78: #{tpu_custom_call.1} parent=67 // pred_check_branch
          %2027 = sbr.rel (%p2025) target = $region80
        $region79: #{tpu_custom_call.1} parent=67 // pred_region
          %s2028 = sand.u32 %s32, 1
          %s2029 = scalar_lea.sflag [#allocation11], %s2028
          %s2030 = sand.u32 %s160, 1
          %s2031 = scalar_lea.vmem [#allocation12], %s2030
          %2032 = dma.done %s2029, 16
        $region80: #{tpu_custom_call.1} parent=67 // pred_fallthru
          _
        // Predicated region
        $region81: #{tpu_custom_call.1} parent=67 // pred_check
          %p2033 = pneg %p201
        $region82: #{tpu_custom_call.1} parent=67 // pred_check_branch
          %2035 = sbr.rel (%p2033) target = $region84
        $region83: #{tpu_custom_call.1} parent=67 // pred_region
          %s2036 = sand.u32 %s186, 1
          %s2037 = scalar_lea.sflag [#allocation14], %s2036
          %s2038 = sand.u32 %s186, 1
          %s2039 = scalar_lea.vmem [#allocation13], %s2038
          %2040 = dma.done %s2037, 16
        $region84: #{tpu_custom_call.1} parent=67 // pred_fallthru
          _
      $region68: #{tpu_custom_call.1} parent=5 // pred_fallthru
        _
    $region6: #{tpu_custom_call.1} parent=1 // loop_footer
      %s30 = sadd.s32 1, %s26
    $region7: #{tpu_custom_call.1} parent=1 // loop_footer_branch
      %25 = sbr.rel target = $region3
    $region8: #{tpu_custom_call.1} parent=1 // loop_exit
      _
    %2041 = vsyncpa [#allocation4], 1
    %s2042 = scalar_lea.sflag [#allocation4], 1
    %2043 = vsyncpa %s2042, 1
    %2044 = vsyncpa [#allocation7], 1
    %s2045 = scalar_lea.sflag [#allocation7], 1
    %2046 = vsyncpa %s2045, 1
    %2047 = vsyncpa [#allocation5], 1
    %s2048 = scalar_lea.sflag [#allocation5], 1
    %2049 = vsyncpa %s2048, 1
    %2050 = vsyncpa [#allocation11], 1
    %s2051 = scalar_lea.sflag [#allocation11], 1
    %2052 = vsyncpa %s2051, 1
    %2053 = vsyncpa [#allocation14], 1
    %s2054 = scalar_lea.sflag [#allocation14], 1
    %2055 = vsyncpa %s2054, 1

</llo_original>
